<compile_context>
chip_gen: v6e
topology: v6e:2x2x1
jax: 0.10.0
libtpu: 0.0.40
codegen_flags: <defaults>
</compile_context>

<pallas_src>
import jax
import jax.numpy as jnp
from jax.experimental import pallas as pl
from jax.experimental.pallas import tpu as pltpu

# ----------------------- configuration (args.*) -----------------------------
TIMEBASE_PE = 4                       # args.timebase_pe
TIMES_CH = 2 * TIMEBASE_PE + 1        # 9
TIMENET_WIDTH = 32                    # args.timenet_width
TIMENET_OUTPUT = 9                    # args.timenet_output (3 euler + 6 extra)
OUT_COLS = 16                         # 9 rot + 6 trans + 1 pad (lane-dense slab)
LANE = 128

# ----------------------- packed-parameter slab layout ------------------------
# Every segment starts on a multiple of 8 rows (sublane-tile aligned).
R_POC8 = 0     # [1, 8]   [poc, poc]
R_PHASE = 8    # [1, 8]   [0,0,0,0, pi/2 x4]  (cos(x) == sin(x + pi/2))
R_W0T = 16     # [1, 32]  w0 rows for the raw-t column of emb
R_W0SC = 24    # [8, 32]  w0 rows for [sin | cos]
R_B0 = 32      # [1, 32]
R_W1 = 40      # [32, 32]
R_B1 = 72      # [1, 32]
R_W2H = 80     # [32, 32] w2 rows for h (timenet0 output)
R_W2T = 112    # [1, 32]  w2 rows for raw-t column of emb
R_W2SC = 120   # [8, 32]  w2 rows for [sin | cos]
R_B2 = 128     # [1, 32]
R_W3 = 136     # [32, 32]
R_B3 = 168     # [1, 32]
R_W4 = 176     # [32, 32] (timenet_out weight, cols >= 9 zero-padded)
SLAB_ROWS = 208


# ----------------------------- kernel bodies ---------------------------------
def _pose_mlp_body(t_ref, W, out_ref):
    """timenet0 -> timenet1 -> timenet_out -> euler2mat, one [TB,16] store."""
    f32 = jnp.float32
    t = t_ref[...]                                        # [TB, 1]

    def dot(a, b):
        return jnp.dot(a, b, preferred_element_type=f32)

    # merged positional encoding: one sin pass gives [sin(t*poc) | cos(t*poc)]
    poc8 = W[R_POC8:R_POC8 + 1, 0:2 * TIMEBASE_PE]        # [1, 8]
    phase = W[R_PHASE:R_PHASE + 1, 0:2 * TIMEBASE_PE]     # [1, 8]
    sc = jnp.sin(t * poc8 + phase)                        # [TB, 8]

    # timenet0 layer 0: emb @ w0 + b0, emb = [t | sin | cos] split across slab
    h = (t * W[R_W0T:R_W0T + 1, :]
         + dot(sc, W[R_W0SC:R_W0SC + 2 * TIMEBASE_PE, :])
         + W[R_B0:R_B0 + 1, :])
    h = jnp.maximum(h, 0.0)
    # timenet0 layer 1
    h = jnp.maximum(dot(h, W[R_W1:R_W1 + TIMENET_WIDTH, :]) + W[R_B1:R_B1 + 1, :], 0.0)

    # timenet1 layer 0: cat([h, emb]) @ w2 + b2, w2 split [h | t | sin | cos]
    g = (dot(h, W[R_W2H:R_W2H + TIMENET_WIDTH, :])
         + t * W[R_W2T:R_W2T + 1, :]
         + dot(sc, W[R_W2SC:R_W2SC + 2 * TIMEBASE_PE, :])
         + W[R_B2:R_B2 + 1, :])
    g = jnp.maximum(g, 0.0)
    # timenet1 layer 1
    g = jnp.maximum(dot(g, W[R_W3:R_W3 + TIMENET_WIDTH, :]) + W[R_B3:R_B3 + 1, :], 0.0)

    # timenet_out (bias=False); w4 zero-padded to 32 cols -> pf[:, 9:] == 0.
    pf = dot(g, W[R_W4:R_W4 + TIMENET_WIDTH, :])          # [TB, 32]

    # euler2mat(pf[:, 0:3]) expanded analytically: R = X(x) @ Y(y) @ Z(z).
    x = pf[:, 0:1]
    y = pf[:, 1:2]
    z = pf[:, 2:3]
    cx, sx = jnp.cos(x), jnp.sin(x)
    cy, sy = jnp.cos(y), jnp.sin(y)
    cz, sz = jnp.cos(z), jnp.sin(z)

    # single assembled [TB, 16] slab: 9 rot cols, 6 trans cols, 1 zero pad
    out_ref[...] = jnp.concatenate(
        [cy * cz, -cy * sz, sy,
         sx * sy * cz + cx * sz, -sx * sy * sz + cx * cz, -sx * cy,
         -cx * sy * cz + sx * sz, cx * sy * sz + sx * cz, cx * cy,
         pf[:, 3:10]],                                    # trans + zero pad col
        axis=-1)


def pose_mlp_kernel(t_ref, w_ref, out_ref):
    _pose_mlp_body(t_ref, w_ref, out_ref)


def fused_pose_cvd_kernel(t_ref, scale_ref, w_ref, depth_ref, pose_ref, cvd_ref):
    # Pose MLP only once per batch tile (first HW step); its output block is
    # resident across the "arbitrary" HW axis and flushed once at the end.
    @pl.when(pl.program_id(1) == 0)
    def _():
        _pose_mlp_body(t_ref, w_ref, pose_ref)

    # memory-bound depth scaling: CVD = depth * scale (per-row scale)
    cvd_ref[...] = depth_ref[...] * scale_ref[...]


# ----------------------- parameter packing -----------------------------------
def _pack_params(params):
    """Pack all weights/biases/time_poc into one [SLAB_ROWS, 32] f32 slab."""
    pe, w = TIMEBASE_PE, TIMENET_WIDTH
    poc = jnp.asarray(params["time_poc"], jnp.float32).reshape(1, pe)
    poc8 = jnp.concatenate([poc, poc], axis=-1)                    # [1, 8]
    phase = jnp.concatenate([jnp.zeros((1, pe), jnp.float32),
                             jnp.full((1, pe), jnp.pi / 2, jnp.float32)], axis=-1)
    w0 = jnp.asarray(params["w0"], jnp.float32)    # [9, 32]  rows: [t | sin | cos]
    w2 = jnp.asarray(params["w2"], jnp.float32)    # [41, 32] rows: [h | t | sin | cos]
    pieces = [
        (R_POC8, poc8), (R_PHASE, phase),
        (R_W0T, w0[0:1]), (R_W0SC, w0[1:1 + 2 * pe]),
        (R_B0, params["b0"]),
        (R_W1, params["w1"]), (R_B1, params["b1"]),
        (R_W2H, w2[0:w]), (R_W2T, w2[w:w + 1]), (R_W2SC, w2[w + 1:w + 1 + 2 * pe]),
        (R_B2, params["b2"]),
        (R_W3, params["w3"]), (R_B3, params["b3"]),
        (R_W4, params["w4"]),
    ]
    slab = jnp.zeros((SLAB_ROWS, TIMENET_WIDTH), jnp.float32)
    for row, arr in pieces:
        arr = jnp.asarray(arr, jnp.float32)
        if arr.shape[1] < TIMENET_WIDTH:
            arr = jnp.pad(arr, ((0, 0), (0, TIMENET_WIDTH - arr.shape[1])))
        slab = jax.lax.dynamic_update_slice(slab, arr, (row, 0))
    return slab


# ------------------------------ wrapper ---------------------------------------
def _round_up(n, m):
    return -(-n // m) * m


def _split_pose(out, B):
    rot = out[:, 0:9].reshape(B, 3, 3)
    trans = out[:, 9:9 + (TIMENET_OUTPUT - 3)]
    return rot, trans


def pose_network_forward(params, times_sel, depth=None,
                         instance_scale_list=None, max_time=None, H=None, W=None):
    B = times_sel.shape[0]
    slab = _pack_params(params)
    t_in = times_sel.astype(jnp.float32).reshape(B, 1)
    b_pad8 = _round_up(B, 8)

    # ---------------- depth=None: pose MLP only, one big batch tile ----------
    if depth is None:
        tb = min(b_pad8, 256)                 # 256 fills v6e/v7x MXU rows
        b_pad = _round_up(b_pad8, tb)
        t_p = jnp.pad(t_in, ((0, b_pad - B), (0, 0))) if b_pad != B else t_in
        out = pl.pallas_call(
            pose_mlp_kernel,
            out_shape=jax.ShapeDtypeStruct((b_pad, OUT_COLS), jnp.float32),
            grid=(b_pad // tb,),
            in_specs=[pl.BlockSpec((tb, 1), lambda i: (i, 0)),
                      pl.BlockSpec((SLAB_ROWS, TIMENET_WIDTH), lambda i: (0, 0))],
            out_specs=pl.BlockSpec((tb, OUT_COLS), lambda i: (i, 0)),
            compiler_params=pltpu.CompilerParams(dimension_semantics=("parallel",)),
        )(t_p, slab)
        return _split_pose(out[:B], B)

    # ---------------- depth path: fused pose MLP + CVD scaling ---------------
    # scalar gather over instance_scale_list is plain-JAX glue (tiny).
    # TODO(synk): could be folded in via PrefetchScalarGridSpec SMEM gather.
    time_index = (times_sel[:, 0] * max_time).astype(jnp.int32)          # [B]
    inst = instance_scale_list[time_index, 0]                            # [B]
    scale = inst / jax.lax.stop_gradient(instance_scale_list[0, 0])      # [B]

    HW = H * W
    depth2 = depth.reshape(B, HW).astype(jnp.float32)
    scale2 = scale.astype(jnp.float32).reshape(B, 1)

    tb = min(b_pad8, 128)
    b_pad = _round_up(b_pad8, tb)
    hw_pad0 = _round_up(HW, LANE)
    # ~2 MiB f32 per depth block: double-buffered in+out (~8 MiB) fits every
    # generation's default scoped VMEM (16 MiB v5e, 32 MiB v6e/v7x) and is
    # large enough (>=1-4 MiB) to track the HBM roofline.
    budget_elems = (2 << 20) // 4
    hw_tile = min(hw_pad0, max(LANE, (budget_elems // tb) // LANE * LANE))
    hw_pad = _round_up(hw_pad0, hw_tile)

    t_p = t_in
    if b_pad != B:
        t_p = jnp.pad(t_in, ((0, b_pad - B), (0, 0)))
        scale2 = jnp.pad(scale2, ((0, b_pad - B), (0, 0)))
    if b_pad != B or hw_pad != HW:
        depth2 = jnp.pad(depth2, ((0, b_pad - B), (0, hw_pad - HW)))

    pose_out, cvd = pl.pallas_call(
        fused_pose_cvd_kernel,
        out_shape=(jax.ShapeDtypeStruct((b_pad, OUT_COLS), jnp.float32),
                   jax.ShapeDtypeStruct((b_pad, hw_pad), jnp.float32)),
        grid=(b_pad // tb, hw_pad // hw_tile),
        in_specs=[pl.BlockSpec((tb, 1), lambda i, j: (i, 0)),
                  pl.BlockSpec((tb, 1), lambda i, j: (i, 0)),
                  pl.BlockSpec((SLAB_ROWS, TIMENET_WIDTH), lambda i, j: (0, 0)),
                  pl.BlockSpec((tb, hw_tile), lambda i, j: (i, j))],
        out_specs=[pl.BlockSpec((tb, OUT_COLS), lambda i, j: (i, 0)),
                   pl.BlockSpec((tb, hw_tile), lambda i, j: (i, j))],
        compiler_params=pltpu.CompilerParams(
            dimension_semantics=("parallel", "arbitrary")),
    )(t_p, scale2, slab, depth2)

    rot, trans = _split_pose(pose_out[:B], B)
    cvd = cvd[:B, :HW].reshape(B, 1, H, W)
    return rot, trans, cvd


# ----------------------- deterministic parameter init ------------------------
def init_params(key):
    def xavier(k, fan_in, fan_out):
        bound = (6.0 / (fan_in + fan_out)) ** 0.5
        return jax.random.uniform(k, (fan_in, fan_out), jnp.float32, -bound, bound)

    ks = jax.random.split(key, 6)
    p = {}
    p["time_poc"] = (2.0 ** jnp.arange(TIMEBASE_PE, dtype=jnp.float32)).reshape(1, TIMEBASE_PE)
    p["w0"] = xavier(ks[0], TIMES_CH, TIMENET_WIDTH)
    p["b0"] = jnp.zeros((1, TIMENET_WIDTH), jnp.float32)
    p["w1"] = xavier(ks[1], TIMENET_WIDTH, TIMENET_WIDTH)
    p["b1"] = jnp.zeros((1, TIMENET_WIDTH), jnp.float32)
    p["w2"] = xavier(ks[2], TIMENET_WIDTH + TIMES_CH, TIMENET_WIDTH)
    p["b2"] = jnp.zeros((1, TIMENET_WIDTH), jnp.float32)
    p["w3"] = xavier(ks[3], TIMENET_WIDTH, TIMENET_WIDTH)
    p["b3"] = jnp.zeros((1, TIMENET_WIDTH), jnp.float32)
    # timenet_out.weight.data.fill_(1e-6), bias=False
    p["w4"] = jnp.full((TIMENET_WIDTH, TIMENET_OUTPUT), 1e-6, jnp.float32)
    return p


# ----------------------------- pure-JAX reference ----------------------------
def _euler2mat_ref(angle):
    x, y, z = angle[:, 0], angle[:, 1], angle[:, 2]
    cz, sz = jnp.cos(z), jnp.sin(z)
    zeros = jnp.zeros_like(z)
    ones = jnp.ones_like(z)
    zmat = jnp.stack([cz, -sz, zeros, sz, cz, zeros, zeros, zeros, ones], 1).reshape(-1, 3, 3)
    cy, sy = jnp.cos(y), jnp.sin(y)
    ymat = jnp.stack([cy, zeros, sy, zeros, ones, zeros, -sy, zeros, cy], 1).reshape(-1, 3, 3)
    cx, sx = jnp.cos(x), jnp.sin(x)
    xmat = jnp.stack([ones, zeros, zeros, zeros, cx, -sx, zeros, sx, cx], 1).reshape(-1, 3, 3)
    return xmat @ ymat @ zmat


def _forward_ref(params, times_sel, depth=None, isl=None, max_time=None, H=None, W=None):
    poc = params["time_poc"].reshape(-1)
    x = times_sel[:, None]                                        # [B,1,1]
    e = (x[..., None] * poc).reshape(x.shape[0], x.shape[1], -1)
    emb = jnp.concatenate([x, jnp.sin(e), jnp.cos(e)], -1)[:, 0]  # [B, TIMES_CH]
    h = jax.nn.relu(emb @ params["w0"] + params["b0"])
    h = jax.nn.relu(h @ params["w1"] + params["b1"])
    h1 = jnp.concatenate([h, emb], axis=1)
    h1 = jax.nn.relu(h1 @ params["w2"] + params["b2"])
    h1 = jax.nn.relu(h1 @ params["w3"] + params["b3"])
    pf = h1 @ params["w4"]
    rot = _euler2mat_ref(pf[:, 0:3])
    if depth is None:
        return rot, pf[:, 3:]
    ti = (times_sel[:, 0] * max_time).astype(jnp.int32)
    scale = isl[ti, 0] / jax.lax.stop_gradient(isl[0, 0])   # matches torch .detach()
    cvd = depth.reshape(-1, 1, H, W) * scale[:, None, None, None]
    return rot, pf[:, 3:], cvd


# --------------------------------- main ---------------------------------------
if __name__ == "__main__":
    key = jax.random.PRNGKey(0)
    pkey, tkey, dkey, ikey = jax.random.split(key, 4)

    params = init_params(pkey)

    B, H, W = 16, 16, 16
    N_CAMS = 10
    max_time = N_CAMS - 1

    times_sel = jax.random.uniform(tkey, (B, 1), jnp.float32)        # in [0, 1)
    depth = jax.random.uniform(dkey, (B, H, W), jnp.float32) + 0.5
    # instance_scale_list is ones at torch init; perturb deterministically so
    # the scale branch is actually exercised (it is a learnable parameter).
    instance_scale_list = (jnp.ones((N_CAMS, 1), jnp.float32)
                           + 0.1 * jax.random.normal(ikey, (N_CAMS, 1), jnp.float32))

    # depth=None path
    rot, trans = pose_network_forward(params, times_sel)
    # depth path (fused pose + CVD)
    rot2, trans2, cvd = pose_network_forward(params, times_sel, depth,
                                             instance_scale_list, max_time, H, W)
    jax.block_until_ready((rot, trans, rot2, trans2, cvd))

    # verify against pure-JAX reference of the torch forward
    rot_r, trans_r = _forward_ref(params, times_sel)
    rot_r2, trans_r2, cvd_r = _forward_ref(params, times_sel, depth,
                                           instance_scale_list, max_time, H, W)
    assert rot.shape == (B, 3, 3) and trans.shape == (B, TIMENET_OUTPUT - 3)
    assert cvd.shape == (B, 1, H, W)
    assert jnp.allclose(rot, rot_r, atol=1e-5)
    assert jnp.allclose(trans, trans_r, atol=1e-5)
    assert jnp.allclose(rot2, rot_r2, atol=1e-5)
    assert jnp.allclose(trans2, trans_r2, atol=1e-5)
    assert jnp.allclose(cvd, cvd_r, atol=1e-5)

    print("KERNEL_OK")
</pallas_src>

<mosaic_0001>
module attributes {stable_mosaic.version = 11 : i64} {
  func.func @pose_mlp_kernel(%arg0: i32, %arg1: memref<16x1xf32, #tpu.memory_space<vmem>>, %arg2: memref<208x32xf32, #tpu.memory_space<vmem>>, %arg3: memref<16x16xf32, #tpu.memory_space<vmem>>) attributes {dimension_semantics = [#tpu.dimension_semantics<parallel>], iteration_bounds = array<i64: 1>, scalar_prefetch = 0 : i64, scratch_operands = 0 : i64, tpu.core_type = #tpu.core_type<tc>, window_params = [{transform_indices = @transform_0, window_bounds = array<i64: 16, 1>}, {pipeline_mode = #tpu.pipeline_mode<synchronous>, transform_indices = @transform_1, window_bounds = array<i64: 208, 32>}, {transform_indices = @transform_2, window_bounds = array<i64: 16, 16>}]} {
    %c0 = arith.constant 0 : index
    %c0_0 = arith.constant 0 : index
    %0 = vector.load %arg1[%c0, %c0_0] : memref<16x1xf32, #tpu.memory_space<vmem>>, vector<16x1xf32>
    %c0_1 = arith.constant 0 : index
    %c0_2 = arith.constant 0 : index
    %1 = vector.load %arg2[%c0_1, %c0_2] : memref<208x32xf32, #tpu.memory_space<vmem>>, vector<1x8xf32>
    %c8 = arith.constant 8 : index
    %c0_3 = arith.constant 0 : index
    %2 = vector.load %arg2[%c8, %c0_3] : memref<208x32xf32, #tpu.memory_space<vmem>>, vector<1x8xf32>
    %3 = vector.broadcast %0 : vector<16x1xf32> to vector<16x8xf32>
    %4 = vector.broadcast %1 : vector<1x8xf32> to vector<16x8xf32>
    %5 = arith.mulf %3, %4 : vector<16x8xf32>
    %6 = vector.broadcast %2 : vector<1x8xf32> to vector<16x8xf32>
    %7 = arith.addf %5, %6 : vector<16x8xf32>
    %8 = math.sin %7 : vector<16x8xf32>
    %c16 = arith.constant 16 : index
    %c0_4 = arith.constant 0 : index
    %9 = vector.load %arg2[%c16, %c0_4] : memref<208x32xf32, #tpu.memory_space<vmem>>, vector<1x32xf32>
    %10 = vector.broadcast %0 : vector<16x1xf32> to vector<16x32xf32>
    %11 = vector.broadcast %9 : vector<1x32xf32> to vector<16x32xf32>
    %12 = arith.mulf %10, %11 : vector<16x32xf32>
    %c24 = arith.constant 24 : index
    %c0_5 = arith.constant 0 : index
    %13 = vector.load %arg2[%c24, %c0_5] : memref<208x32xf32, #tpu.memory_space<vmem>>, vector<8x32xf32>
    %cst = arith.constant dense<0.000000e+00> : vector<16x32xf32>
    %14 = tpu.matmul %8, %13, %cst {dimension_numbers = #tpu.dot_dimension_numbers<[1], [0], [0], [1], [0, 0, 1, 1], [], []>} : vector<16x8xf32>, vector<8x32xf32>, vector<16x32xf32> -> vector<16x32xf32>
    %15 = arith.addf %12, %14 : vector<16x32xf32>
    %c32 = arith.constant 32 : index
    %c0_6 = arith.constant 0 : index
    %16 = vector.load %arg2[%c32, %c0_6] : memref<208x32xf32, #tpu.memory_space<vmem>>, vector<1x32xf32>
    %17 = vector.broadcast %16 : vector<1x32xf32> to vector<16x32xf32>
    %18 = arith.addf %15, %17 : vector<16x32xf32>
    %cst_7 = arith.constant 0.000000e+00 : f32
    %19 = vector.broadcast %cst_7 : f32 to vector<16x32xf32>
    %20 = arith.maximumf %18, %19 : vector<16x32xf32>
    %c40 = arith.constant 40 : index
    %c0_8 = arith.constant 0 : index
    %21 = vector.load %arg2[%c40, %c0_8] : memref<208x32xf32, #tpu.memory_space<vmem>>, vector<32x32xf32>
    %cst_9 = arith.constant dense<0.000000e+00> : vector<16x32xf32>
    %22 = tpu.matmul %20, %21, %cst_9 {dimension_numbers = #tpu.dot_dimension_numbers<[1], [0], [0], [1], [0, 0, 1, 1], [], []>} : vector<16x32xf32>, vector<32x32xf32>, vector<16x32xf32> -> vector<16x32xf32>
    %c72 = arith.constant 72 : index
    %c0_10 = arith.constant 0 : index
    %23 = vector.load %arg2[%c72, %c0_10] : memref<208x32xf32, #tpu.memory_space<vmem>>, vector<1x32xf32>
    %24 = vector.broadcast %23 : vector<1x32xf32> to vector<16x32xf32>
    %25 = arith.addf %22, %24 : vector<16x32xf32>
    %cst_11 = arith.constant 0.000000e+00 : f32
    %26 = vector.broadcast %cst_11 : f32 to vector<16x32xf32>
    %27 = arith.maximumf %25, %26 : vector<16x32xf32>
    %c80 = arith.constant 80 : index
    %c0_12 = arith.constant 0 : index
    %28 = vector.load %arg2[%c80, %c0_12] : memref<208x32xf32, #tpu.memory_space<vmem>>, vector<32x32xf32>
    %cst_13 = arith.constant dense<0.000000e+00> : vector<16x32xf32>
    %29 = tpu.matmul %27, %28, %cst_13 {dimension_numbers = #tpu.dot_dimension_numbers<[1], [0], [0], [1], [0, 0, 1, 1], [], []>} : vector<16x32xf32>, vector<32x32xf32>, vector<16x32xf32> -> vector<16x32xf32>
    %c112 = arith.constant 112 : index
    %c0_14 = arith.constant 0 : index
    %30 = vector.load %arg2[%c112, %c0_14] : memref<208x32xf32, #tpu.memory_space<vmem>>, vector<1x32xf32>
    %31 = vector.broadcast %0 : vector<16x1xf32> to vector<16x32xf32>
    %32 = vector.broadcast %30 : vector<1x32xf32> to vector<16x32xf32>
    %33 = arith.mulf %31, %32 : vector<16x32xf32>
    %34 = arith.addf %29, %33 : vector<16x32xf32>
    %c120 = arith.constant 120 : index
    %c0_15 = arith.constant 0 : index
    %35 = vector.load %arg2[%c120, %c0_15] : memref<208x32xf32, #tpu.memory_space<vmem>>, vector<8x32xf32>
    %cst_16 = arith.constant dense<0.000000e+00> : vector<16x32xf32>
    %36 = tpu.matmul %8, %35, %cst_16 {dimension_numbers = #tpu.dot_dimension_numbers<[1], [0], [0], [1], [0, 0, 1, 1], [], []>} : vector<16x8xf32>, vector<8x32xf32>, vector<16x32xf32> -> vector<16x32xf32>
    %37 = arith.addf %34, %36 : vector<16x32xf32>
    %c128 = arith.constant 128 : index
    %c0_17 = arith.constant 0 : index
    %38 = vector.load %arg2[%c128, %c0_17] : memref<208x32xf32, #tpu.memory_space<vmem>>, vector<1x32xf32>
    %39 = vector.broadcast %38 : vector<1x32xf32> to vector<16x32xf32>
    %40 = arith.addf %37, %39 : vector<16x32xf32>
    %cst_18 = arith.constant 0.000000e+00 : f32
    %41 = vector.broadcast %cst_18 : f32 to vector<16x32xf32>
    %42 = arith.maximumf %40, %41 : vector<16x32xf32>
    %c136 = arith.constant 136 : index
    %c0_19 = arith.constant 0 : index
    %43 = vector.load %arg2[%c136, %c0_19] : memref<208x32xf32, #tpu.memory_space<vmem>>, vector<32x32xf32>
    %cst_20 = arith.constant dense<0.000000e+00> : vector<16x32xf32>
    %44 = tpu.matmul %42, %43, %cst_20 {dimension_numbers = #tpu.dot_dimension_numbers<[1], [0], [0], [1], [0, 0, 1, 1], [], []>} : vector<16x32xf32>, vector<32x32xf32>, vector<16x32xf32> -> vector<16x32xf32>
    %c168 = arith.constant 168 : index
    %c0_21 = arith.constant 0 : index
    %45 = vector.load %arg2[%c168, %c0_21] : memref<208x32xf32, #tpu.memory_space<vmem>>, vector<1x32xf32>
    %46 = vector.broadcast %45 : vector<1x32xf32> to vector<16x32xf32>
    %47 = arith.addf %44, %46 : vector<16x32xf32>
    %cst_22 = arith.constant 0.000000e+00 : f32
    %48 = vector.broadcast %cst_22 : f32 to vector<16x32xf32>
    %49 = arith.maximumf %47, %48 : vector<16x32xf32>
    %c176 = arith.constant 176 : index
    %c0_23 = arith.constant 0 : index
    %50 = vector.load %arg2[%c176, %c0_23] : memref<208x32xf32, #tpu.memory_space<vmem>>, vector<32x32xf32>
    %cst_24 = arith.constant dense<0.000000e+00> : vector<16x32xf32>
    %51 = tpu.matmul %49, %50, %cst_24 {dimension_numbers = #tpu.dot_dimension_numbers<[1], [0], [0], [1], [0, 0, 1, 1], [], []>} : vector<16x32xf32>, vector<32x32xf32>, vector<16x32xf32> -> vector<16x32xf32>
    %52 = vector.extract_strided_slice %51 {offsets = [0, 0], sizes = [16, 1], strides = [1, 1]} : vector<16x32xf32> to vector<16x1xf32>
    %53 = vector.extract_strided_slice %51 {offsets = [0, 1], sizes = [16, 1], strides = [1, 1]} : vector<16x32xf32> to vector<16x1xf32>
    %54 = vector.extract_strided_slice %51 {offsets = [0, 2], sizes = [16, 1], strides = [1, 1]} : vector<16x32xf32> to vector<16x1xf32>
    %55 = math.cos %52 : vector<16x1xf32>
    %56 = math.sin %52 : vector<16x1xf32>
    %57 = math.cos %53 : vector<16x1xf32>
    %58 = math.sin %53 : vector<16x1xf32>
    %59 = math.cos %54 : vector<16x1xf32>
    %60 = math.sin %54 : vector<16x1xf32>
    %61 = arith.mulf %57, %59 : vector<16x1xf32>
    %cst_25 = arith.constant 0.000000e+00 : f32
    %62 = vector.broadcast %cst_25 : f32 to vector<16x1xf32>
    %63 = arith.subf %62, %57 : vector<16x1xf32>
    %64 = arith.mulf %63, %60 : vector<16x1xf32>
    %65 = arith.mulf %56, %58 : vector<16x1xf32>
    %66 = arith.mulf %65, %59 : vector<16x1xf32>
    %67 = arith.mulf %55, %60 : vector<16x1xf32>
    %68 = arith.addf %66, %67 : vector<16x1xf32>
    %cst_26 = arith.constant 0.000000e+00 : f32
    %69 = vector.broadcast %cst_26 : f32 to vector<16x1xf32>
    %70 = arith.subf %69, %56 : vector<16x1xf32>
    %71 = arith.mulf %70, %58 : vector<16x1xf32>
    %72 = arith.mulf %71, %60 : vector<16x1xf32>
    %73 = arith.mulf %55, %59 : vector<16x1xf32>
    %74 = arith.addf %72, %73 : vector<16x1xf32>
    %cst_27 = arith.constant 0.000000e+00 : f32
    %75 = vector.broadcast %cst_27 : f32 to vector<16x1xf32>
    %76 = arith.subf %75, %56 : vector<16x1xf32>
    %77 = arith.mulf %76, %57 : vector<16x1xf32>
    %cst_28 = arith.constant 0.000000e+00 : f32
    %78 = vector.broadcast %cst_28 : f32 to vector<16x1xf32>
    %79 = arith.subf %78, %55 : vector<16x1xf32>
    %80 = arith.mulf %79, %58 : vector<16x1xf32>
    %81 = arith.mulf %80, %59 : vector<16x1xf32>
    %82 = arith.mulf %56, %60 : vector<16x1xf32>
    %83 = arith.addf %81, %82 : vector<16x1xf32>
    %84 = arith.mulf %55, %58 : vector<16x1xf32>
    %85 = arith.mulf %84, %60 : vector<16x1xf32>
    %86 = arith.mulf %56, %59 : vector<16x1xf32>
    %87 = arith.addf %85, %86 : vector<16x1xf32>
    %88 = arith.mulf %55, %57 : vector<16x1xf32>
    %89 = vector.extract_strided_slice %51 {offsets = [0, 3], sizes = [16, 7], strides = [1, 1]} : vector<16x32xf32> to vector<16x7xf32>
    %90 = tpu.concatenate %61, %64, %58, %68, %74, %77, %83, %87, %88, %89 in 1 : vector<16x1xf32>, vector<16x1xf32>, vector<16x1xf32>, vector<16x1xf32>, vector<16x1xf32>, vector<16x1xf32>, vector<16x1xf32>, vector<16x1xf32>, vector<16x1xf32>, vector<16x7xf32> -> vector<16x16xf32>
    %c0_29 = arith.constant 0 : index
    %c0_30 = arith.constant 0 : index
    %91 = vector.load %arg3[%c0_29, %c0_30] : memref<16x16xf32, #tpu.memory_space<vmem>>, vector<16x16xf32>
    tpu.vector_store %arg3[%c0_29, %c0_30], %90 {strides = array<i32>} : memref<16x16xf32, #tpu.memory_space<vmem>>, vector<16x16xf32>,
    return
  }
  func.func @transform_0(%arg0: i32) -> (i32, i32) {
    %c0_i32 = arith.constant 0 : i32
    %c0_i32_0 = arith.constant 0 : i32
    return %arg0, %c0_i32 : i32, i32
  }
  func.func @transform_1(%arg0: i32) -> (i32, i32) {
    %c0_i32 = arith.constant 0 : i32
    %c0_i32_0 = arith.constant 0 : i32
    %c0_i32_1 = arith.constant 0 : i32
    return %c0_i32, %c0_i32_0 : i32, i32
  }
  func.func @transform_2(%arg0: i32) -> (i32, i32) {
    %c0_i32 = arith.constant 0 : i32
    %c0_i32_0 = arith.constant 0 : i32
    return %arg0, %c0_i32 : i32, i32
  }
}

</mosaic_0001>

<llo_original>
// kernel: tpu_custom_call.1
$region0: #{tpu_custom_call.1}
  #allocation0 [shape = 'u32[]', space=smem, size = 0x4, offset = 0x4, fixed_abs, tag = 'smem constant byte address 0x4 - core index']
  #allocation1 [shape = 'u32[144,128]{1,0:T(1,128)}', space=vmem, size = 0x12000, scoped, tag = 'internal scratch']
  %s0 = inlined_call_operand.vmem [shape: f32[16,1], index: 0, kind: input, shape index: {}]
  %s1 = inlined_call_operand.vmem [shape: f32[208,32], index: 1, kind: input, shape index: {}]
  %s2 = inlined_call_operand.hbm [shape: f32[16,16], index: 2, kind: output, shape index: {}]
  %s3 = sld [smem:[#allocation0]]
  $region18: #{tpu_custom_call.1} parent=0
    _
  %s5 = ssub.s32 1, %s3
  %s6 = scalar_select 0, %s5, %s3
  $region1: #{tpu_custom_call.1} parent=0
    #allocation2 [shape = 'u8[8192]{0}', space=vmem, size = 0x2000, scoped, tag = 'output window, operand 0, single buffered']
    #allocation3 [shape = 's32[1]{0}', space=sflag, size = 0x4, scoped, tag = 'scoped memory for tpu_custom_call.1']
    %7 = vsyncpa [#allocation3], 0
    // Predicated region
    $region2: #{tpu_custom_call.1} parent=1 // pred_check
      _
    $region3: #{tpu_custom_call.1} parent=1 // pred_check_branch
      %9 = sbr.rel (0) target = $region5
    $region4: #{tpu_custom_call.1} parent=1 // pred_region
      _
    $region5: #{tpu_custom_call.1} parent=1 // pred_fallthru
      _
    // Predicated region
    $region6: #{tpu_custom_call.1} parent=1 // pred_check
      _
    $region7: #{tpu_custom_call.1} parent=1 // pred_check_branch
      %11 = sbr.rel (0) target = $region9
    $region8: #{tpu_custom_call.1} parent=1 // pred_region
      _
    $region9: #{tpu_custom_call.1} parent=1 // pred_fallthru
      _
    %v12 = vld [vmem:[%s0] sm:$0xff]
    %v13 = vld [vmem:[%s0 + $0x8] sm:$0xff]
    %v14 = vld [vmem:[%s1] sm:$0x1]
    %v15 = vld [vmem:[%s1 + $0x8] sm:$0x1]
    %17 = vset.pattern.permute.xlu0 0
    %18 = vperm.xlu0 %17, %v12
    %v19 = vpop.permute.xlu0 %18
    %22 = vset.pattern.permute.xlu0 0
    %23 = vperm.xlu0 %22, %v13
    %v24 = vpop.permute.xlu0 %23
    %v26 = vlaneseq
    %v27 = vshrl.u32 %v26, 7
    %v28 = vsub.s32 0, %v27
    %v29 = vrot.slane %v14, %v28
    %v30 = vmul.f32 %v19, %v29
    %v31 = vmul.f32 %v24, %v29
    %v32 = vlaneseq
    %v33 = vshrl.u32 %v32, 7
    %v34 = vsub.s32 0, %v33
    %v35 = vrot.slane %v15, %v34
    %v36 = vadd.f32 %v30, %v35
    %v37 = vadd.f32 %v31, %v35
    %v38 = vand.u32 2147483647, %v36
    %vm39 = vcmp.le.f32.partialorder %v38, 0.7853982
    %vm40 = vcmp.lt.s32.totalorder %v36, 0
    %v41 = vand.u32 %v36, 2139095040
    %v42 = vshrl.u32 %v41, 23
    %v43 = vsub.s32 %v42, 127
    %v44 = vand.u32 2147483647, %v36
    %v45 = vand.u32 %v44, 8388607
    %v46 = vor.u32 %v45, 8388608
    %v47 = vsub.s32 0, %v46
    %v48 = vadd.s32 %v43, 1
    %vm49 = vcmp.gt.s32.totalorder %v48, 0
    %v50 = vsel %vm49, %v48, 0
    %v51 = vshrl.u32 %v50, 5
    %v52 = vand.u32 %v50, 31
    %v53 = vsub.s32 32, %v52
    %v54 = vshrl.u32 683565275, %v53
    %v55 = vshll.u32 683565275, %v52
    %v56 = vshrl.u32 2475754826, %v53
    %v57 = vor.u32 %v55, %v56
    %v58 = vshll.u32 2475754826, %v52
    %v59 = vshrl.u32 2131351028, %v53
    %v60 = vor.u32 %v58, %v59
    %v61 = vshll.u32 2131351028, %v52
    %v62 = vshrl.u32 2102212464, %v53
    %v63 = vor.u32 %v61, %v62
    %v64 = vshll.u32 2102212464, %v52
    %v65 = vshrl.u32 920167782, %v53
    %v66 = vor.u32 %v64, %v65
    %v67 = vshll.u32 920167782, %v52
    %v68 = vshrl.u32 1326507024, %v53
    %v69 = vor.u32 %v67, %v68
    %vm70 = vcmp.lt.s32.totalorder %v51, 1
    %vm71 = vcmp.lt.s32.totalorder %v51, 2
    %vm72 = vcmp.lt.s32.totalorder %v51, 3
    %vm73 = vcmp.lt.s32.totalorder %v51, 4
    %v74 = vsel %vm70, %v54, %v57
    %v75 = vsel %vm73, %v63, 2102212464
    %v76 = vsel %vm72, %v60, %v75
    %v77 = vsel %vm71, %v74, %v76
    %v78 = vsel %vm70, %v57, %v60
    %v79 = vsel %vm73, %v66, 920167782
    %v80 = vsel %vm72, %v63, %v79
    %v81 = vsel %vm71, %v78, %v80
    %v82 = vsel %vm70, %v60, %v63
    %v83 = vsel %vm73, %v69, 1326507024
    %v84 = vsel %vm72, %v66, %v83
    %v85 = vsel %vm71, %v82, %v84
    %v86 = vshll.u32 %v46, 8
    %v87 = vmul.u32.u64.compose %v86, %v85
    %v88 = vextract.low.u32 %v87
    %v89 = vextract.high.u32 %v87
    %v90 = vmul.u32.u64.compose %v86, %v81
    %v91 = vextract.low.u32 %v90
    %v92 = vextract.high.u32 %v90
    %v93 = vmul.u32 %v86, %v77
    %v94 = vadd.s32 %v89, %v91
    %vm95 = vc.u32 %v89, %v91
    %v96 = vadd.s32 %v92, 1
    %v97 = vsel %vm95, %v96, %v92
    %v98 = vadd.s32 %v93, %v97
    %v99 = vadd.s32 %v98, 536870912
    %v100 = vshrl.u32 %v99, 30
    %v101 = vshll.u32 %v100, 30
    %v102 = vsub.s32 %v98, %v101
    %vm103 = vcmp.lt.s32.totalorder %v102, 0
    %v104 = vsub.s32 0, %v102
    %v105 = vsel %vm103, %v104, %v102
    %v106 = vclz %v105
    %v107 = vsub.s32 %v106, 2
    %vm108 = vcmp.gt.s32.totalorder 0, %v107
    %v109 = vsel %vm108, 0, %v107
    %v110 = vsub.s32 32, %v109
    %v111 = vshll.u32 %v102, %v109
    %v112 = vshrl.u32 %v94, %v110
    %v113 = vor.u32 %v111, %v112
    %v114 = vsub.s32 4294967266, %v109
    %v115 = vadd.s32 %v114, 127
    %v116 = vshll.u32 %v115, 23
    %v117 = vor.u32 4788187, %v116
    %v118 = vand.u32 2147483647, %v117
    %v120 = vcvt.s32.f32 %v113
    %v121 = vmul.f32 %v120, %v118
    %v122 = vxor.u32 %v121, 2147483648
    %v123 = vsel %vm40, %v122, %v121
    %v124 = vsub.s32 4, %v100
    %v125 = vsel %vm40, %v124, %v100
    %v126 = vsel %vm39, %v36, %v123
    %v127 = vsel %vm39, 0, %v125
    %v128 = vcosq.f32.pop %v126
    %v129 = vsinq.f32.pop %v126
    %vm130 = vweird.f32 %v36
    %v131 = vadd.s32 %v127, 3
    %v132 = vand.u32 %v131, 3
    %vm133 = vcmp.lt.s32.totalorder %v132, 2
    %vm134 = vcmp.eq.s32.totalorder %v132, 0
    %v135 = vxor.u32 %v129, 2147483648
    %v136 = vsel %vm134, %v128, %v135
    %vm137 = vcmp.eq.s32.totalorder %v132, 2
    %v138 = vxor.u32 %v128, 2147483648
    %v139 = vsel %vm137, %v138, %v129
    %v140 = vsel %vm133, %v136, %v139
    %v141 = vsel %vm130, nan, %v140
    %v142 = vand.u32 2147483647, %v37
    %vm143 = vcmp.le.f32.partialorder %v142, 0.7853982
    %vm144 = vcmp.lt.s32.totalorder %v37, 0
    %v145 = vand.u32 %v37, 2139095040
    %v146 = vshrl.u32 %v145, 23
    %v147 = vsub.s32 %v146, 127
    %v148 = vand.u32 2147483647, %v37
    %v149 = vand.u32 %v148, 8388607
    %v150 = vor.u32 %v149, 8388608
    %v151 = vsub.s32 0, %v150
    %v152 = vadd.s32 %v147, 1
    %vm153 = vcmp.gt.s32.totalorder %v152, 0
    %v154 = vsel %vm153, %v152, 0
    %v155 = vshrl.u32 %v154, 5
    %v156 = vand.u32 %v154, 31
    %v157 = vsub.s32 32, %v156
    %v158 = vshrl.u32 683565275, %v157
    %v159 = vshll.u32 683565275, %v156
    %v160 = vshrl.u32 2475754826, %v157
    %v161 = vor.u32 %v159, %v160
    %v162 = vshll.u32 2475754826, %v156
    %v163 = vshrl.u32 2131351028, %v157
    %v164 = vor.u32 %v162, %v163
    %v165 = vshll.u32 2131351028, %v156
    %v166 = vshrl.u32 2102212464, %v157
    %v167 = vor.u32 %v165, %v166
    %v168 = vshll.u32 2102212464, %v156
    %v169 = vshrl.u32 920167782, %v157
    %v170 = vor.u32 %v168, %v169
    %v171 = vshll.u32 920167782, %v156
    %v172 = vshrl.u32 1326507024, %v157
    %v173 = vor.u32 %v171, %v172
    %vm174 = vcmp.lt.s32.totalorder %v155, 1
    %vm175 = vcmp.lt.s32.totalorder %v155, 2
    %vm176 = vcmp.lt.s32.totalorder %v155, 3
    %vm177 = vcmp.lt.s32.totalorder %v155, 4
    %v178 = vsel %vm174, %v158, %v161
    %v179 = vsel %vm177, %v167, 2102212464
    %v180 = vsel %vm176, %v164, %v179
    %v181 = vsel %vm175, %v178, %v180
    %v182 = vsel %vm174, %v161, %v164
    %v183 = vsel %vm177, %v170, 920167782
    %v184 = vsel %vm176, %v167, %v183
    %v185 = vsel %vm175, %v182, %v184
    %v186 = vsel %vm174, %v164, %v167
    %v187 = vsel %vm177, %v173, 1326507024
    %v188 = vsel %vm176, %v170, %v187
    %v189 = vsel %vm175, %v186, %v188
    %v190 = vshll.u32 %v150, 8
    %v191 = vmul.u32.u64.compose %v190, %v189
    %v192 = vextract.low.u32 %v191
    %v193 = vextract.high.u32 %v191
    %v194 = vmul.u32.u64.compose %v190, %v185
    %v195 = vextract.low.u32 %v194
    %v196 = vextract.high.u32 %v194
    %v197 = vmul.u32 %v190, %v181
    %v198 = vadd.s32 %v193, %v195
    %vm199 = vc.u32 %v193, %v195
    %v200 = vadd.s32 %v196, 1
    %v201 = vsel %vm199, %v200, %v196
    %v202 = vadd.s32 %v197, %v201
    %v203 = vadd.s32 %v202, 536870912
    %v204 = vshrl.u32 %v203, 30
    %v205 = vshll.u32 %v204, 30
    %v206 = vsub.s32 %v202, %v205
    %vm207 = vcmp.lt.s32.totalorder %v206, 0
    %v208 = vsub.s32 0, %v206
    %v209 = vsel %vm207, %v208, %v206
    %v210 = vclz %v209
    %v211 = vsub.s32 %v210, 2
    %vm212 = vcmp.gt.s32.totalorder 0, %v211
    %v213 = vsel %vm212, 0, %v211
    %v214 = vsub.s32 32, %v213
    %v215 = vshll.u32 %v206, %v213
    %v216 = vshrl.u32 %v198, %v214
    %v217 = vor.u32 %v215, %v216
    %v218 = vsub.s32 4294967266, %v213
    %v219 = vadd.s32 %v218, 127
    %v220 = vshll.u32 %v219, 23
    %v221 = vor.u32 4788187, %v220
    %v222 = vand.u32 2147483647, %v221
    %v224 = vcvt.s32.f32 %v217
    %v225 = vmul.f32 %v224, %v222
    %v226 = vxor.u32 %v225, 2147483648
    %v227 = vsel %vm144, %v226, %v225
    %v228 = vsub.s32 4, %v204
    %v229 = vsel %vm144, %v228, %v204
    %v230 = vsel %vm143, %v37, %v227
    %v231 = vsel %vm143, 0, %v229
    %v232 = vcosq.f32.pop %v230
    %v233 = vsinq.f32.pop %v230
    %vm234 = vweird.f32 %v37
    %v235 = vadd.s32 %v231, 3
    %v236 = vand.u32 %v235, 3
    %vm237 = vcmp.lt.s32.totalorder %v236, 2
    %vm238 = vcmp.eq.s32.totalorder %v236, 0
    %v239 = vxor.u32 %v233, 2147483648
    %v240 = vsel %vm238, %v232, %v239
    %vm241 = vcmp.eq.s32.totalorder %v236, 2
    %v242 = vxor.u32 %v232, 2147483648
    %v243 = vsel %vm241, %v242, %v233
    %v244 = vsel %vm237, %v240, %v243
    %v245 = vsel %vm234, nan, %v244
    %v246 = vld [vmem:[%s1 + $0x10] sm:$0x1]
    %v247 = vlaneseq
    %v248 = vshrl.u32 %v247, 7
    %v249 = vsub.s32 0, %v248
    %v250 = vrot.slane %v246, %v249
    %v251 = vmul.f32 %v19, %v250
    %v252 = vmul.f32 %v24, %v250
    %v253 = vld [vmem:[%s1 + $0x18] sm:$0xff]
    %vm254 = vcmask 64512
    %v256 = vsel %vm254, %v141, 0
    %v259 = vsel %vm254, %v245, 0
    %261 = vmatprep.subr.mxu0 0.0
    %262 = vmatpush1.msra.mxu0 0.0
    %263 = vmatprep.subr.mxu0 0.0
    %264 = vmatpush1.msra.mxu0 0.0
    %265 = vmatprep.subr.mxu0 0.0
    %266 = vmatpush1.msra.mxu0 0.0
    %267 = vmatprep.subr.mxu0 0.0
    %268 = vmatpush1.msra.mxu0 0.0
    %269 = vmatprep.subr.mxu0 0.0
    %270 = vmatpush1.msra.mxu0 0.0
    %271 = vmatprep.subr.mxu0 0.0
    %272 = vmatpush1.msra.mxu0 0.0
    %273 = vmatprep.subr.mxu0 0.0
    %274 = vmatpush1.msra.mxu0 0.0
    %275 = vmatprep.subr.mxu0 0.0
    %276 = vmatpush1.msra.mxu0 0.0
    %277 = vmatprep.subr.mxu0 0.0
    %278 = vmatpush1.msra.mxu0 0.0
    %279 = vmatprep.subr.mxu0 0.0
    %280 = vmatpush1.msra.mxu0 0.0
    %281 = vmatprep.subr.mxu0 0.0
    %282 = vmatpush1.msra.mxu0 0.0
    %283 = vmatprep.subr.mxu0 0.0
    %284 = vmatpush1.msra.mxu0 0.0
    %285 = vmatprep.subr.mxu0 0.0
    %286 = vmatpush1.msra.mxu0 0.0
    %287 = vmatprep.subr.mxu0 0.0
    %288 = vmatpush1.msra.mxu0 0.0
    %289 = vmatprep.subr.mxu0 0.0
    %290 = vmatpush1.msra.mxu0 0.0
    %291 = vmatprep.subr.mxu0 0.0
    %292 = vmatpush1.msra.mxu0 %v253
    %293 = vmatprep.subr.mxu0 0.0
    %294 = vmatpush2.msra.mxu0 0.0
    %295 = vmatprep.subr.mxu0 0.0
    %296 = vmatpush2.msra.mxu0 0.0
    %297 = vmatprep.subr.mxu0 0.0
    %298 = vmatpush2.msra.mxu0 0.0
    %299 = vmatprep.subr.mxu0 0.0
    %300 = vmatpush2.msra.mxu0 0.0
    %301 = vmatprep.subr.mxu0 0.0
    %302 = vmatpush2.msra.mxu0 0.0
    %303 = vmatprep.subr.mxu0 0.0
    %304 = vmatpush2.msra.mxu0 0.0
    %305 = vmatprep.subr.mxu0 0.0
    %306 = vmatpush2.msra.mxu0 0.0
    %307 = vmatprep.subr.mxu0 0.0
    %308 = vmatpush2.msra.mxu0 0.0
    %309 = vmatprep.subr.mxu0 0.0
    %310 = vmatpush2.msra.mxu0 0.0
    %311 = vmatprep.subr.mxu0 0.0
    %312 = vmatpush2.msra.mxu0 0.0
    %313 = vmatprep.subr.mxu0 0.0
    %314 = vmatpush2.msra.mxu0 0.0
    %315 = vmatprep.subr.mxu0 0.0
    %316 = vmatpush2.msra.mxu0 0.0
    %317 = vmatprep.subr.mxu0 0.0
    %318 = vmatpush2.msra.mxu0 0.0
    %319 = vmatprep.subr.mxu0 0.0
    %320 = vmatpush2.msra.mxu0 0.0
    %321 = vmatprep.subr.mxu0 0.0
    %322 = vmatpush2.msra.mxu0 0.0
    %323 = vmatprep.subr.mxu0 0.0
    %324 = vmatpush2.msra.mxu0 0.0
    %325 = vmatprep.mubr.f32.mxu0 0.0
    %326 = vmatmul.mubr.f32.gmra.mxu0 %v256
    %v327 = vpop.f32.mrf.mxu0
    %v328 = vadd.f32 0.0, %v327
    %v329 = vpop.f32.mrf.mxu0
    %330 = vmatprep.mubr.f32.mxu0 0.0
    %331 = vmatmul.mubr.f32.gmra.mxu0 %v259
    %v332 = vpop.f32.mrf.mxu0
    %v333 = vadd.f32 0.0, %v332
    %v334 = vpop.f32.mrf.mxu0
    %335 = vdwg.mxu0
    %v336 = vadd.f32 %v251, %v328
    %v337 = vadd.f32 %v252, %v333
    %v338 = vld [vmem:[%s1 + $0x20] sm:$0x1]
    %v339 = vlaneseq
    %v340 = vshrl.u32 %v339, 7
    %v341 = vsub.s32 0, %v340
    %v342 = vrot.slane %v338, %v341
    %v343 = vadd.f32 %v336, %v342
    %v344 = vadd.f32 %v337, %v342
    %v345 = vmax.f32 %v343, 0.0
    %v346 = vmax.f32 %v344, 0.0
    %v347 = vld [vmem:[%s1 + $0x28] sm:$0xff]
    %v348 = vld [vmem:[%s1 + $0x30] sm:$0xff]
    %v349 = vld [vmem:[%s1 + $0x38] sm:$0xff]
    %v350 = vld [vmem:[%s1 + $0x40] sm:$0xff]
    %v351 = vld [vmem:[%s1 + $0x48] sm:$0x1]
    %v352 = vlaneseq
    %v353 = vshrl.u32 %v352, 7
    %v354 = vsub.s32 0, %v353
    %v355 = vrot.slane %v351, %v354
    %vm356 = vcmask 261120
    %v358 = vsel %vm356, %v345, 0
    %v361 = vsel %vm356, %v346, 0
    %363 = vmatprep.subr.mxu0 0.0
    %364 = vmatpush1.msra.mxu0 0.0
    %365 = vmatprep.subr.mxu0 0.0
    %366 = vmatpush1.msra.mxu0 0.0
    %367 = vmatprep.subr.mxu0 0.0
    %368 = vmatpush1.msra.mxu0 0.0
    %369 = vmatprep.subr.mxu0 0.0
    %370 = vmatpush1.msra.mxu0 0.0
    %371 = vmatprep.subr.mxu0 0.0
    %372 = vmatpush1.msra.mxu0 0.0
    %373 = vmatprep.subr.mxu0 0.0
    %374 = vmatpush1.msra.mxu0 0.0
    %375 = vmatprep.subr.mxu0 0.0
    %376 = vmatpush1.msra.mxu0 0.0
    %377 = vmatprep.subr.mxu0 0.0
    %378 = vmatpush1.msra.mxu0 0.0
    %379 = vmatprep.subr.mxu0 0.0
    %380 = vmatpush1.msra.mxu0 0.0
    %381 = vmatprep.subr.mxu0 0.0
    %382 = vmatpush1.msra.mxu0 0.0
    %383 = vmatprep.subr.mxu0 0.0
    %384 = vmatpush1.msra.mxu0 0.0
    %385 = vmatprep.subr.mxu0 0.0
    %386 = vmatpush1.msra.mxu0 0.0
    %387 = vmatprep.subr.mxu0 0.0
    %388 = vmatpush1.msra.mxu0 %v350
    %389 = vmatprep.subr.mxu0 0.0
    %390 = vmatpush1.msra.mxu0 %v349
    %391 = vmatprep.subr.mxu0 0.0
    %392 = vmatpush1.msra.mxu0 %v348
    %393 = vmatprep.subr.mxu0 0.0
    %394 = vmatpush1.msra.mxu0 %v347
    %395 = vmatprep.subr.mxu0 0.0
    %396 = vmatpush2.msra.mxu0 0.0
    %397 = vmatprep.subr.mxu0 0.0
    %398 = vmatpush2.msra.mxu0 0.0
    %399 = vmatprep.subr.mxu0 0.0
    %400 = vmatpush2.msra.mxu0 0.0
    %401 = vmatprep.subr.mxu0 0.0
    %402 = vmatpush2.msra.mxu0 0.0
    %403 = vmatprep.subr.mxu0 0.0
    %404 = vmatpush2.msra.mxu0 0.0
    %405 = vmatprep.subr.mxu0 0.0
    %406 = vmatpush2.msra.mxu0 0.0
    %407 = vmatprep.subr.mxu0 0.0
    %408 = vmatpush2.msra.mxu0 0.0
    %409 = vmatprep.subr.mxu0 0.0
    %410 = vmatpush2.msra.mxu0 0.0
    %411 = vmatprep.subr.mxu0 0.0
    %412 = vmatpush2.msra.mxu0 0.0
    %413 = vmatprep.subr.mxu0 0.0
    %414 = vmatpush2.msra.mxu0 0.0
    %415 = vmatprep.subr.mxu0 0.0
    %416 = vmatpush2.msra.mxu0 0.0
    %417 = vmatprep.subr.mxu0 0.0
    %418 = vmatpush2.msra.mxu0 0.0
    %419 = vmatprep.subr.mxu0 0.0
    %420 = vmatpush2.msra.mxu0 0.0
    %421 = vmatprep.subr.mxu0 0.0
    %422 = vmatpush2.msra.mxu0 0.0
    %423 = vmatprep.subr.mxu0 0.0
    %424 = vmatpush2.msra.mxu0 0.0
    %425 = vmatprep.subr.mxu0 0.0
    %426 = vmatpush2.msra.mxu0 0.0
    %427 = vmatprep.mubr.f32.mxu0 0.0
    %428 = vmatmul.mubr.f32.gmra.mxu0 %v358
    %v429 = vpop.f32.mrf.mxu0
    %v430 = vadd.f32 %v355, %v429
    %v431 = vpop.f32.mrf.mxu0
    %432 = vmatprep.mubr.f32.mxu0 0.0
    %433 = vmatmul.mubr.f32.gmra.mxu0 %v361
    %v434 = vpop.f32.mrf.mxu0
    %v435 = vadd.f32 %v355, %v434
    %v436 = vpop.f32.mrf.mxu0
    %437 = vdwg.mxu0
    %v438 = vmax.f32 %v430, 0.0
    %v439 = vmax.f32 %v435, 0.0
    %v440 = vld [vmem:[%s1 + $0x50] sm:$0xff]
    %v441 = vld [vmem:[%s1 + $0x58] sm:$0xff]
    %v442 = vld [vmem:[%s1 + $0x60] sm:$0xff]
    %v443 = vld [vmem:[%s1 + $0x68] sm:$0xff]
    %v444 = vld [vmem:[%s1 + $0x70] sm:$0x1]
    %v445 = vlaneseq
    %v446 = vshrl.u32 %v445, 7
    %v447 = vsub.s32 0, %v446
    %v448 = vrot.slane %v444, %v447
    %v449 = vmul.f32 %v19, %v448
    %v450 = vmul.f32 %v24, %v448
    %v452 = vsel %vm356, %v438, 0
    %v455 = vsel %vm356, %v439, 0
    %457 = vmatprep.subr.mxu0 0.0
    %458 = vmatpush1.msra.mxu0 0.0
    %459 = vmatprep.subr.mxu0 0.0
    %460 = vmatpush1.msra.mxu0 0.0
    %461 = vmatprep.subr.mxu0 0.0
    %462 = vmatpush1.msra.mxu0 0.0
    %463 = vmatprep.subr.mxu0 0.0
    %464 = vmatpush1.msra.mxu0 0.0
    %465 = vmatprep.subr.mxu0 0.0
    %466 = vmatpush1.msra.mxu0 0.0
    %467 = vmatprep.subr.mxu0 0.0
    %468 = vmatpush1.msra.mxu0 0.0
    %469 = vmatprep.subr.mxu0 0.0
    %470 = vmatpush1.msra.mxu0 0.0
    %471 = vmatprep.subr.mxu0 0.0
    %472 = vmatpush1.msra.mxu0 0.0
    %473 = vmatprep.subr.mxu0 0.0
    %474 = vmatpush1.msra.mxu0 0.0
    %475 = vmatprep.subr.mxu0 0.0
    %476 = vmatpush1.msra.mxu0 0.0
    %477 = vmatprep.subr.mxu0 0.0
    %478 = vmatpush1.msra.mxu0 0.0
    %479 = vmatprep.subr.mxu0 0.0
    %480 = vmatpush1.msra.mxu0 0.0
    %481 = vmatprep.subr.mxu0 0.0
    %482 = vmatpush1.msra.mxu0 %v443
    %483 = vmatprep.subr.mxu0 0.0
    %484 = vmatpush1.msra.mxu0 %v442
    %485 = vmatprep.subr.mxu0 0.0
    %486 = vmatpush1.msra.mxu0 %v441
    %487 = vmatprep.subr.mxu0 0.0
    %488 = vmatpush1.msra.mxu0 %v440
    %489 = vmatprep.subr.mxu0 0.0
    %490 = vmatpush2.msra.mxu0 0.0
    %491 = vmatprep.subr.mxu0 0.0
    %492 = vmatpush2.msra.mxu0 0.0
    %493 = vmatprep.subr.mxu0 0.0
    %494 = vmatpush2.msra.mxu0 0.0
    %495 = vmatprep.subr.mxu0 0.0
    %496 = vmatpush2.msra.mxu0 0.0
    %497 = vmatprep.subr.mxu0 0.0
    %498 = vmatpush2.msra.mxu0 0.0
    %499 = vmatprep.subr.mxu0 0.0
    %500 = vmatpush2.msra.mxu0 0.0
    %501 = vmatprep.subr.mxu0 0.0
    %502 = vmatpush2.msra.mxu0 0.0
    %503 = vmatprep.subr.mxu0 0.0
    %504 = vmatpush2.msra.mxu0 0.0
    %505 = vmatprep.subr.mxu0 0.0
    %506 = vmatpush2.msra.mxu0 0.0
    %507 = vmatprep.subr.mxu0 0.0
    %508 = vmatpush2.msra.mxu0 0.0
    %509 = vmatprep.subr.mxu0 0.0
    %510 = vmatpush2.msra.mxu0 0.0
    %511 = vmatprep.subr.mxu0 0.0
    %512 = vmatpush2.msra.mxu0 0.0
    %513 = vmatprep.subr.mxu0 0.0
    %514 = vmatpush2.msra.mxu0 0.0
    %515 = vmatprep.subr.mxu0 0.0
    %516 = vmatpush2.msra.mxu0 0.0
    %517 = vmatprep.subr.mxu0 0.0
    %518 = vmatpush2.msra.mxu0 0.0
    %519 = vmatprep.subr.mxu0 0.0
    %520 = vmatpush2.msra.mxu0 0.0
    %521 = vmatprep.mubr.f32.mxu0 0.0
    %522 = vmatmul.mubr.f32.gmra.mxu0 %v452
    %v523 = vpop.f32.mrf.mxu0
    %v524 = vadd.f32 %v449, %v523
    %v525 = vpop.f32.mrf.mxu0
    %526 = vmatprep.mubr.f32.mxu0 0.0
    %527 = vmatmul.mubr.f32.gmra.mxu0 %v455
    %v528 = vpop.f32.mrf.mxu0
    %v529 = vadd.f32 %v450, %v528
    %v530 = vpop.f32.mrf.mxu0
    %531 = vdwg.mxu0
    %v532 = vld [vmem:[%s1 + $0x78] sm:$0xff]
    %533 = vmatprep.subr.mxu0 0.0
    %534 = vmatpush1.msra.mxu0 0.0
    %535 = vmatprep.subr.mxu0 0.0
    %536 = vmatpush1.msra.mxu0 0.0
    %537 = vmatprep.subr.mxu0 0.0
    %538 = vmatpush1.msra.mxu0 0.0
    %539 = vmatprep.subr.mxu0 0.0
    %540 = vmatpush1.msra.mxu0 0.0
    %541 = vmatprep.subr.mxu0 0.0
    %542 = vmatpush1.msra.mxu0 0.0
    %543 = vmatprep.subr.mxu0 0.0
    %544 = vmatpush1.msra.mxu0 0.0
    %545 = vmatprep.subr.mxu0 0.0
    %546 = vmatpush1.msra.mxu0 0.0
    %547 = vmatprep.subr.mxu0 0.0
    %548 = vmatpush1.msra.mxu0 0.0
    %549 = vmatprep.subr.mxu0 0.0
    %550 = vmatpush1.msra.mxu0 0.0
    %551 = vmatprep.subr.mxu0 0.0
    %552 = vmatpush1.msra.mxu0 0.0
    %553 = vmatprep.subr.mxu0 0.0
    %554 = vmatpush1.msra.mxu0 0.0
    %555 = vmatprep.subr.mxu0 0.0
    %556 = vmatpush1.msra.mxu0 0.0
    %557 = vmatprep.subr.mxu0 0.0
    %558 = vmatpush1.msra.mxu0 0.0
    %559 = vmatprep.subr.mxu0 0.0
    %560 = vmatpush1.msra.mxu0 0.0
    %561 = vmatprep.subr.mxu0 0.0
    %562 = vmatpush1.msra.mxu0 0.0
    %563 = vmatprep.subr.mxu0 0.0
    %564 = vmatpush1.msra.mxu0 %v532
    %565 = vmatprep.subr.mxu0 0.0
    %566 = vmatpush2.msra.mxu0 0.0
    %567 = vmatprep.subr.mxu0 0.0
    %568 = vmatpush2.msra.mxu0 0.0
    %569 = vmatprep.subr.mxu0 0.0
    %570 = vmatpush2.msra.mxu0 0.0
    %571 = vmatprep.subr.mxu0 0.0
    %572 = vmatpush2.msra.mxu0 0.0
    %573 = vmatprep.subr.mxu0 0.0
    %574 = vmatpush2.msra.mxu0 0.0
    %575 = vmatprep.subr.mxu0 0.0
    %576 = vmatpush2.msra.mxu0 0.0
    %577 = vmatprep.subr.mxu0 0.0
    %578 = vmatpush2.msra.mxu0 0.0
    %579 = vmatprep.subr.mxu0 0.0
    %580 = vmatpush2.msra.mxu0 0.0
    %581 = vmatprep.subr.mxu0 0.0
    %582 = vmatpush2.msra.mxu0 0.0
    %583 = vmatprep.subr.mxu0 0.0
    %584 = vmatpush2.msra.mxu0 0.0
    %585 = vmatprep.subr.mxu0 0.0
    %586 = vmatpush2.msra.mxu0 0.0
    %587 = vmatprep.subr.mxu0 0.0
    %588 = vmatpush2.msra.mxu0 0.0
    %589 = vmatprep.subr.mxu0 0.0
    %590 = vmatpush2.msra.mxu0 0.0
    %591 = vmatprep.subr.mxu0 0.0
    %592 = vmatpush2.msra.mxu0 0.0
    %593 = vmatprep.subr.mxu0 0.0
    %594 = vmatpush2.msra.mxu0 0.0
    %595 = vmatprep.subr.mxu0 0.0
    %596 = vmatpush2.msra.mxu0 0.0
    %597 = vmatprep.mubr.f32.mxu0 0.0
    %598 = vmatmul.mubr.f32.gmra.mxu0 %v256
    %v599 = vpop.f32.mrf.mxu0
    %v600 = vadd.f32 0.0, %v599
    %v601 = vpop.f32.mrf.mxu0
    %602 = vmatprep.mubr.f32.mxu0 0.0
    %603 = vmatmul.mubr.f32.gmra.mxu0 %v259
    %v604 = vpop.f32.mrf.mxu0
    %v605 = vadd.f32 0.0, %v604
    %v606 = vpop.f32.mrf.mxu0
    %607 = vdwg.mxu0
    %v608 = vadd.f32 %v524, %v600
    %v609 = vadd.f32 %v529, %v605
    %v610 = vld [vmem:[%s1 + $0x80] sm:$0x1]
    %v611 = vlaneseq
    %v612 = vshrl.u32 %v611, 7
    %v613 = vsub.s32 0, %v612
    %v614 = vrot.slane %v610, %v613
    %v615 = vadd.f32 %v608, %v614
    %v616 = vadd.f32 %v609, %v614
    %v617 = vmax.f32 %v615, 0.0
    %v618 = vmax.f32 %v616, 0.0
    %v619 = vld [vmem:[%s1 + $0x88] sm:$0xff]
    %v620 = vld [vmem:[%s1 + $0x90] sm:$0xff]
    %v621 = vld [vmem:[%s1 + $0x98] sm:$0xff]
    %v622 = vld [vmem:[%s1 + $0xa0] sm:$0xff]
    %v623 = vld [vmem:[%s1 + $0xa8] sm:$0x1]
    %v624 = vlaneseq
    %v625 = vshrl.u32 %v624, 7
    %v626 = vsub.s32 0, %v625
    %v627 = vrot.slane %v623, %v626
    %v629 = vsel %vm356, %v617, 0
    %v632 = vsel %vm356, %v618, 0
    %634 = vmatprep.subr.mxu0 0.0
    %635 = vmatpush1.msra.mxu0 0.0
    %636 = vmatprep.subr.mxu0 0.0
    %637 = vmatpush1.msra.mxu0 0.0
    %638 = vmatprep.subr.mxu0 0.0
    %639 = vmatpush1.msra.mxu0 0.0
    %640 = vmatprep.subr.mxu0 0.0
    %641 = vmatpush1.msra.mxu0 0.0
    %642 = vmatprep.subr.mxu0 0.0
    %643 = vmatpush1.msra.mxu0 0.0
    %644 = vmatprep.subr.mxu0 0.0
    %645 = vmatpush1.msra.mxu0 0.0
    %646 = vmatprep.subr.mxu0 0.0
    %647 = vmatpush1.msra.mxu0 0.0
    %648 = vmatprep.subr.mxu0 0.0
    %649 = vmatpush1.msra.mxu0 0.0
    %650 = vmatprep.subr.mxu0 0.0
    %651 = vmatpush1.msra.mxu0 0.0
    %652 = vmatprep.subr.mxu0 0.0
    %653 = vmatpush1.msra.mxu0 0.0
    %654 = vmatprep.subr.mxu0 0.0
    %655 = vmatpush1.msra.mxu0 0.0
    %656 = vmatprep.subr.mxu0 0.0
    %657 = vmatpush1.msra.mxu0 0.0
    %658 = vmatprep.subr.mxu0 0.0
    %659 = vmatpush1.msra.mxu0 %v622
    %660 = vmatprep.subr.mxu0 0.0
    %661 = vmatpush1.msra.mxu0 %v621
    %662 = vmatprep.subr.mxu0 0.0
    %663 = vmatpush1.msra.mxu0 %v620
    %664 = vmatprep.subr.mxu0 0.0
    %665 = vmatpush1.msra.mxu0 %v619
    %666 = vmatprep.subr.mxu0 0.0
    %667 = vmatpush2.msra.mxu0 0.0
    %668 = vmatprep.subr.mxu0 0.0
    %669 = vmatpush2.msra.mxu0 0.0
    %670 = vmatprep.subr.mxu0 0.0
    %671 = vmatpush2.msra.mxu0 0.0
    %672 = vmatprep.subr.mxu0 0.0
    %673 = vmatpush2.msra.mxu0 0.0
    %674 = vmatprep.subr.mxu0 0.0
    %675 = vmatpush2.msra.mxu0 0.0
    %676 = vmatprep.subr.mxu0 0.0
    %677 = vmatpush2.msra.mxu0 0.0
    %678 = vmatprep.subr.mxu0 0.0
    %679 = vmatpush2.msra.mxu0 0.0
    %680 = vmatprep.subr.mxu0 0.0
    %681 = vmatpush2.msra.mxu0 0.0
    %682 = vmatprep.subr.mxu0 0.0
    %683 = vmatpush2.msra.mxu0 0.0
    %684 = vmatprep.subr.mxu0 0.0
    %685 = vmatpush2.msra.mxu0 0.0
    %686 = vmatprep.subr.mxu0 0.0
    %687 = vmatpush2.msra.mxu0 0.0
    %688 = vmatprep.subr.mxu0 0.0
    %689 = vmatpush2.msra.mxu0 0.0
    %690 = vmatprep.subr.mxu0 0.0
    %691 = vmatpush2.msra.mxu0 0.0
    %692 = vmatprep.subr.mxu0 0.0
    %693 = vmatpush2.msra.mxu0 0.0
    %694 = vmatprep.subr.mxu0 0.0
    %695 = vmatpush2.msra.mxu0 0.0
    %696 = vmatprep.subr.mxu0 0.0
    %697 = vmatpush2.msra.mxu0 0.0
    %698 = vmatprep.mubr.f32.mxu0 0.0
    %699 = vmatmul.mubr.f32.gmra.mxu0 %v629
    %v700 = vpop.f32.mrf.mxu0
    %v701 = vadd.f32 %v627, %v700
    %v702 = vpop.f32.mrf.mxu0
    %703 = vmatprep.mubr.f32.mxu0 0.0
    %704 = vmatmul.mubr.f32.gmra.mxu0 %v632
    %v705 = vpop.f32.mrf.mxu0
    %v706 = vadd.f32 %v627, %v705
    %v707 = vpop.f32.mrf.mxu0
    %708 = vdwg.mxu0
    %v709 = vmax.f32 %v701, 0.0
    %v710 = vmax.f32 %v706, 0.0
    %v711 = vld [vmem:[%s1 + $0xb0] sm:$0xff]
    %v712 = vld [vmem:[%s1 + $0xb8] sm:$0xff]
    %v713 = vld [vmem:[%s1 + $0xc0] sm:$0xff]
    %v714 = vld [vmem:[%s1 + $0xc8] sm:$0xff]
    %v716 = vsel %vm356, %v709, 0
    %v719 = vsel %vm356, %v710, 0
    %721 = vmatprep.subr.mxu0 0.0
    %722 = vmatpush1.msra.mxu0 0.0
    %723 = vmatprep.subr.mxu0 0.0
    %724 = vmatpush1.msra.mxu0 0.0
    %725 = vmatprep.subr.mxu0 0.0
    %726 = vmatpush1.msra.mxu0 0.0
    %727 = vmatprep.subr.mxu0 0.0
    %728 = vmatpush1.msra.mxu0 0.0
    %729 = vmatprep.subr.mxu0 0.0
    %730 = vmatpush1.msra.mxu0 0.0
    %731 = vmatprep.subr.mxu0 0.0
    %732 = vmatpush1.msra.mxu0 0.0
    %733 = vmatprep.subr.mxu0 0.0
    %734 = vmatpush1.msra.mxu0 0.0
    %735 = vmatprep.subr.mxu0 0.0
    %736 = vmatpush1.msra.mxu0 0.0
    %737 = vmatprep.subr.mxu0 0.0
    %738 = vmatpush1.msra.mxu0 0.0
    %739 = vmatprep.subr.mxu0 0.0
    %740 = vmatpush1.msra.mxu0 0.0
    %741 = vmatprep.subr.mxu0 0.0
    %742 = vmatpush1.msra.mxu0 0.0
    %743 = vmatprep.subr.mxu0 0.0
    %744 = vmatpush1.msra.mxu0 0.0
    %745 = vmatprep.subr.mxu0 0.0
    %746 = vmatpush1.msra.mxu0 %v714
    %747 = vmatprep.subr.mxu0 0.0
    %748 = vmatpush1.msra.mxu0 %v713
    %749 = vmatprep.subr.mxu0 0.0
    %750 = vmatpush1.msra.mxu0 %v712
    %751 = vmatprep.subr.mxu0 0.0
    %752 = vmatpush1.msra.mxu0 %v711
    %753 = vmatprep.subr.mxu0 0.0
    %754 = vmatpush2.msra.mxu0 0.0
    %755 = vmatprep.subr.mxu0 0.0
    %756 = vmatpush2.msra.mxu0 0.0
    %757 = vmatprep.subr.mxu0 0.0
    %758 = vmatpush2.msra.mxu0 0.0
    %759 = vmatprep.subr.mxu0 0.0
    %760 = vmatpush2.msra.mxu0 0.0
    %761 = vmatprep.subr.mxu0 0.0
    %762 = vmatpush2.msra.mxu0 0.0
    %763 = vmatprep.subr.mxu0 0.0
    %764 = vmatpush2.msra.mxu0 0.0
    %765 = vmatprep.subr.mxu0 0.0
    %766 = vmatpush2.msra.mxu0 0.0
    %767 = vmatprep.subr.mxu0 0.0
    %768 = vmatpush2.msra.mxu0 0.0
    %769 = vmatprep.subr.mxu0 0.0
    %770 = vmatpush2.msra.mxu0 0.0
    %771 = vmatprep.subr.mxu0 0.0
    %772 = vmatpush2.msra.mxu0 0.0
    %773 = vmatprep.subr.mxu0 0.0
    %774 = vmatpush2.msra.mxu0 0.0
    %775 = vmatprep.subr.mxu0 0.0
    %776 = vmatpush2.msra.mxu0 0.0
    %777 = vmatprep.subr.mxu0 0.0
    %778 = vmatpush2.msra.mxu0 0.0
    %779 = vmatprep.subr.mxu0 0.0
    %780 = vmatpush2.msra.mxu0 0.0
    %781 = vmatprep.subr.mxu0 0.0
    %782 = vmatpush2.msra.mxu0 0.0
    %783 = vmatprep.subr.mxu0 0.0
    %784 = vmatpush2.msra.mxu0 0.0
    %785 = vmatprep.mubr.f32.mxu0 0.0
    %786 = vmatmul.mubr.f32.gmra.mxu0 %v716
    %v787 = vpop.f32.mrf.mxu0
    %v788 = vadd.f32 0.0, %v787
    %v789 = vpop.f32.mrf.mxu0
    %790 = vmatprep.mubr.f32.mxu0 0.0
    %791 = vmatmul.mubr.f32.gmra.mxu0 %v719
    %v792 = vpop.f32.mrf.mxu0
    %v793 = vadd.f32 0.0, %v792
    %v794 = vpop.f32.mrf.mxu0
    %795 = vdwg.mxu0
    %v796 = vand.u32 2147483647, %v788
    %vm797 = vcmp.le.f32.partialorder %v796, 0.7853982
    %vm798 = vcmp.lt.s32.totalorder %v788, 0
    %v799 = vand.u32 %v788, 2139095040
    %v800 = vshrl.u32 %v799, 23
    %v801 = vsub.s32 %v800, 127
    %v802 = vand.u32 2147483647, %v788
    %v803 = vand.u32 %v802, 8388607
    %v804 = vor.u32 %v803, 8388608
    %v805 = vsub.s32 0, %v804
    %v806 = vadd.s32 %v801, 1
    %vm807 = vcmp.gt.s32.totalorder %v806, 0
    %v808 = vsel %vm807, %v806, 0
    %v809 = vshrl.u32 %v808, 5
    %v810 = vand.u32 %v808, 31
    %v811 = vsub.s32 32, %v810
    %v812 = vshrl.u32 683565275, %v811
    %v813 = vshll.u32 683565275, %v810
    %v814 = vshrl.u32 2475754826, %v811
    %v815 = vor.u32 %v813, %v814
    %v816 = vshll.u32 2475754826, %v810
    %v817 = vshrl.u32 2131351028, %v811
    %v818 = vor.u32 %v816, %v817
    %v819 = vshll.u32 2131351028, %v810
    %v820 = vshrl.u32 2102212464, %v811
    %v821 = vor.u32 %v819, %v820
    %v822 = vshll.u32 2102212464, %v810
    %v823 = vshrl.u32 920167782, %v811
    %v824 = vor.u32 %v822, %v823
    %v825 = vshll.u32 920167782, %v810
    %v826 = vshrl.u32 1326507024, %v811
    %v827 = vor.u32 %v825, %v826
    %vm828 = vcmp.lt.s32.totalorder %v809, 1
    %vm829 = vcmp.lt.s32.totalorder %v809, 2
    %vm830 = vcmp.lt.s32.totalorder %v809, 3
    %vm831 = vcmp.lt.s32.totalorder %v809, 4
    %v832 = vsel %vm828, %v812, %v815
    %v833 = vsel %vm831, %v821, 2102212464
    %v834 = vsel %vm830, %v818, %v833
    %v835 = vsel %vm829, %v832, %v834
    %v836 = vsel %vm828, %v815, %v818
    %v837 = vsel %vm831, %v824, 920167782
    %v838 = vsel %vm830, %v821, %v837
    %v839 = vsel %vm829, %v836, %v838
    %v840 = vsel %vm828, %v818, %v821
    %v841 = vsel %vm831, %v827, 1326507024
    %v842 = vsel %vm830, %v824, %v841
    %v843 = vsel %vm829, %v840, %v842
    %v844 = vshll.u32 %v804, 8
    %v845 = vmul.u32.u64.compose %v844, %v843
    %v846 = vextract.low.u32 %v845
    %v847 = vextract.high.u32 %v845
    %v848 = vmul.u32.u64.compose %v844, %v839
    %v849 = vextract.low.u32 %v848
    %v850 = vextract.high.u32 %v848
    %v851 = vmul.u32 %v844, %v835
    %v852 = vadd.s32 %v847, %v849
    %vm853 = vc.u32 %v847, %v849
    %v854 = vadd.s32 %v850, 1
    %v855 = vsel %vm853, %v854, %v850
    %v856 = vadd.s32 %v851, %v855
    %v857 = vadd.s32 %v856, 536870912
    %v858 = vshrl.u32 %v857, 30
    %v859 = vshll.u32 %v858, 30
    %v860 = vsub.s32 %v856, %v859
    %vm861 = vcmp.lt.s32.totalorder %v860, 0
    %v862 = vsub.s32 0, %v860
    %v863 = vsel %vm861, %v862, %v860
    %v864 = vclz %v863
    %v865 = vsub.s32 %v864, 2
    %vm866 = vcmp.gt.s32.totalorder 0, %v865
    %v867 = vsel %vm866, 0, %v865
    %v868 = vsub.s32 32, %v867
    %v869 = vshll.u32 %v860, %v867
    %v870 = vshrl.u32 %v852, %v868
    %v871 = vor.u32 %v869, %v870
    %v872 = vsub.s32 4294967266, %v867
    %v873 = vadd.s32 %v872, 127
    %v874 = vshll.u32 %v873, 23
    %v875 = vor.u32 4788187, %v874
    %v876 = vand.u32 2147483647, %v875
    %v878 = vcvt.s32.f32 %v871
    %v879 = vmul.f32 %v878, %v876
    %v880 = vxor.u32 %v879, 2147483648
    %v881 = vsel %vm798, %v880, %v879
    %v882 = vsub.s32 4, %v858
    %v883 = vsel %vm798, %v882, %v858
    %v884 = vsel %vm797, %v788, %v881
    %v885 = vsel %vm797, 0, %v883
    %v886 = vcosq.f32.pop %v884
    %v887 = vsinq.f32.pop %v884
    %vm888 = vweird.f32 %v788
    %v889 = vand.u32 %v885, 3
    %vm890 = vcmp.lt.s32.totalorder %v889, 2
    %vm891 = vcmp.eq.s32.totalorder %v889, 0
    %v892 = vxor.u32 %v887, 2147483648
    %v893 = vsel %vm891, %v886, %v892
    %vm894 = vcmp.eq.s32.totalorder %v889, 2
    %v895 = vxor.u32 %v886, 2147483648
    %v896 = vsel %vm894, %v895, %v887
    %v897 = vsel %vm890, %v893, %v896
    %v898 = vsel %vm888, nan, %v897
    %v899 = vand.u32 2147483647, %v793
    %vm900 = vcmp.le.f32.partialorder %v899, 0.7853982
    %vm901 = vcmp.lt.s32.totalorder %v793, 0
    %v902 = vand.u32 %v793, 2139095040
    %v903 = vshrl.u32 %v902, 23
    %v904 = vsub.s32 %v903, 127
    %v905 = vand.u32 2147483647, %v793
    %v906 = vand.u32 %v905, 8388607
    %v907 = vor.u32 %v906, 8388608
    %v908 = vsub.s32 0, %v907
    %v909 = vadd.s32 %v904, 1
    %vm910 = vcmp.gt.s32.totalorder %v909, 0
    %v911 = vsel %vm910, %v909, 0
    %v912 = vshrl.u32 %v911, 5
    %v913 = vand.u32 %v911, 31
    %v914 = vsub.s32 32, %v913
    %v915 = vshrl.u32 683565275, %v914
    %v916 = vshll.u32 683565275, %v913
    %v917 = vshrl.u32 2475754826, %v914
    %v918 = vor.u32 %v916, %v917
    %v919 = vshll.u32 2475754826, %v913
    %v920 = vshrl.u32 2131351028, %v914
    %v921 = vor.u32 %v919, %v920
    %v922 = vshll.u32 2131351028, %v913
    %v923 = vshrl.u32 2102212464, %v914
    %v924 = vor.u32 %v922, %v923
    %v925 = vshll.u32 2102212464, %v913
    %v926 = vshrl.u32 920167782, %v914
    %v927 = vor.u32 %v925, %v926
    %v928 = vshll.u32 920167782, %v913
    %v929 = vshrl.u32 1326507024, %v914
    %v930 = vor.u32 %v928, %v929
    %vm931 = vcmp.lt.s32.totalorder %v912, 1
    %vm932 = vcmp.lt.s32.totalorder %v912, 2
    %vm933 = vcmp.lt.s32.totalorder %v912, 3
    %vm934 = vcmp.lt.s32.totalorder %v912, 4
    %v935 = vsel %vm931, %v915, %v918
    %v936 = vsel %vm934, %v924, 2102212464
    %v937 = vsel %vm933, %v921, %v936
    %v938 = vsel %vm932, %v935, %v937
    %v939 = vsel %vm931, %v918, %v921
    %v940 = vsel %vm934, %v927, 920167782
    %v941 = vsel %vm933, %v924, %v940
    %v942 = vsel %vm932, %v939, %v941
    %v943 = vsel %vm931, %v921, %v924
    %v944 = vsel %vm934, %v930, 1326507024
    %v945 = vsel %vm933, %v927, %v944
    %v946 = vsel %vm932, %v943, %v945
    %v947 = vshll.u32 %v907, 8
    %v948 = vmul.u32.u64.compose %v947, %v946
    %v949 = vextract.low.u32 %v948
    %v950 = vextract.high.u32 %v948
    %v951 = vmul.u32.u64.compose %v947, %v942
    %v952 = vextract.low.u32 %v951
    %v953 = vextract.high.u32 %v951
    %v954 = vmul.u32 %v947, %v938
    %v955 = vadd.s32 %v950, %v952
    %vm956 = vc.u32 %v950, %v952
    %v957 = vadd.s32 %v953, 1
    %v958 = vsel %vm956, %v957, %v953
    %v959 = vadd.s32 %v954, %v958
    %v960 = vadd.s32 %v959, 536870912
    %v961 = vshrl.u32 %v960, 30
    %v962 = vshll.u32 %v961, 30
    %v963 = vsub.s32 %v959, %v962
    %vm964 = vcmp.lt.s32.totalorder %v963, 0
    %v965 = vsub.s32 0, %v963
    %v966 = vsel %vm964, %v965, %v963
    %v967 = vclz %v966
    %v968 = vsub.s32 %v967, 2
    %vm969 = vcmp.gt.s32.totalorder 0, %v968
    %v970 = vsel %vm969, 0, %v968
    %v971 = vsub.s32 32, %v970
    %v972 = vshll.u32 %v963, %v970
    %v973 = vshrl.u32 %v955, %v971
    %v974 = vor.u32 %v972, %v973
    %v975 = vsub.s32 4294967266, %v970
    %v976 = vadd.s32 %v975, 127
    %v977 = vshll.u32 %v976, 23
    %v978 = vor.u32 4788187, %v977
    %v979 = vand.u32 2147483647, %v978
    %v981 = vcvt.s32.f32 %v974
    %v982 = vmul.f32 %v981, %v979
    %v983 = vxor.u32 %v982, 2147483648
    %v984 = vsel %vm901, %v983, %v982
    %v985 = vsub.s32 4, %v961
    %v986 = vsel %vm901, %v985, %v961
    %v987 = vsel %vm900, %v793, %v984
    %v988 = vsel %vm900, 0, %v986
    %v989 = vcosq.f32.pop %v987
    %v990 = vsinq.f32.pop %v987
    %vm991 = vweird.f32 %v793
    %v992 = vand.u32 %v988, 3
    %vm993 = vcmp.lt.s32.totalorder %v992, 2
    %vm994 = vcmp.eq.s32.totalorder %v992, 0
    %v995 = vxor.u32 %v990, 2147483648
    %v996 = vsel %vm994, %v989, %v995
    %vm997 = vcmp.eq.s32.totalorder %v992, 2
    %v998 = vxor.u32 %v989, 2147483648
    %v999 = vsel %vm997, %v998, %v990
    %v1000 = vsel %vm993, %v996, %v999
    %v1001 = vsel %vm991, nan, %v1000
    %v1002 = vand.u32 2147483647, %v788
    %vm1003 = vcmp.le.f32.partialorder %v1002, 0.7853982
    %vm1004 = vcmp.lt.s32.totalorder %v788, 0
    %v1005 = vand.u32 %v788, 2139095040
    %v1006 = vshrl.u32 %v1005, 23
    %v1007 = vsub.s32 %v1006, 127
    %v1008 = vand.u32 2147483647, %v788
    %v1009 = vand.u32 %v1008, 8388607
    %v1010 = vor.u32 %v1009, 8388608
    %v1011 = vsub.s32 0, %v1010
    %v1012 = vadd.s32 %v1007, 1
    %vm1013 = vcmp.gt.s32.totalorder %v1012, 0
    %v1014 = vsel %vm1013, %v1012, 0
    %v1015 = vshrl.u32 %v1014, 5
    %v1016 = vand.u32 %v1014, 31
    %v1017 = vsub.s32 32, %v1016
    %v1018 = vshrl.u32 683565275, %v1017
    %v1019 = vshll.u32 683565275, %v1016
    %v1020 = vshrl.u32 2475754826, %v1017
    %v1021 = vor.u32 %v1019, %v1020
    %v1022 = vshll.u32 2475754826, %v1016
    %v1023 = vshrl.u32 2131351028, %v1017
    %v1024 = vor.u32 %v1022, %v1023
    %v1025 = vshll.u32 2131351028, %v1016
    %v1026 = vshrl.u32 2102212464, %v1017
    %v1027 = vor.u32 %v1025, %v1026
    %v1028 = vshll.u32 2102212464, %v1016
    %v1029 = vshrl.u32 920167782, %v1017
    %v1030 = vor.u32 %v1028, %v1029
    %v1031 = vshll.u32 920167782, %v1016
    %v1032 = vshrl.u32 1326507024, %v1017
    %v1033 = vor.u32 %v1031, %v1032
    %vm1034 = vcmp.lt.s32.totalorder %v1015, 1
    %vm1035 = vcmp.lt.s32.totalorder %v1015, 2
    %vm1036 = vcmp.lt.s32.totalorder %v1015, 3
    %vm1037 = vcmp.lt.s32.totalorder %v1015, 4
    %v1038 = vsel %vm1034, %v1018, %v1021
    %v1039 = vsel %vm1037, %v1027, 2102212464
    %v1040 = vsel %vm1036, %v1024, %v1039
    %v1041 = vsel %vm1035, %v1038, %v1040
    %v1042 = vsel %vm1034, %v1021, %v1024
    %v1043 = vsel %vm1037, %v1030, 920167782
    %v1044 = vsel %vm1036, %v1027, %v1043
    %v1045 = vsel %vm1035, %v1042, %v1044
    %v1046 = vsel %vm1034, %v1024, %v1027
    %v1047 = vsel %vm1037, %v1033, 1326507024
    %v1048 = vsel %vm1036, %v1030, %v1047
    %v1049 = vsel %vm1035, %v1046, %v1048
    %v1050 = vshll.u32 %v1010, 8
    %v1051 = vmul.u32.u64.compose %v1050, %v1049
    %v1052 = vextract.low.u32 %v1051
    %v1053 = vextract.high.u32 %v1051
    %v1054 = vmul.u32.u64.compose %v1050, %v1045
    %v1055 = vextract.low.u32 %v1054
    %v1056 = vextract.high.u32 %v1054
    %v1057 = vmul.u32 %v1050, %v1041
    %v1058 = vadd.s32 %v1053, %v1055
    %vm1059 = vc.u32 %v1053, %v1055
    %v1060 = vadd.s32 %v1056, 1
    %v1061 = vsel %vm1059, %v1060, %v1056
    %v1062 = vadd.s32 %v1057, %v1061
    %v1063 = vadd.s32 %v1062, 536870912
    %v1064 = vshrl.u32 %v1063, 30
    %v1065 = vshll.u32 %v1064, 30
    %v1066 = vsub.s32 %v1062, %v1065
    %vm1067 = vcmp.lt.s32.totalorder %v1066, 0
    %v1068 = vsub.s32 0, %v1066
    %v1069 = vsel %vm1067, %v1068, %v1066
    %v1070 = vclz %v1069
    %v1071 = vsub.s32 %v1070, 2
    %vm1072 = vcmp.gt.s32.totalorder 0, %v1071
    %v1073 = vsel %vm1072, 0, %v1071
    %v1074 = vsub.s32 32, %v1073
    %v1075 = vshll.u32 %v1066, %v1073
    %v1076 = vshrl.u32 %v1058, %v1074
    %v1077 = vor.u32 %v1075, %v1076
    %v1078 = vsub.s32 4294967266, %v1073
    %v1079 = vadd.s32 %v1078, 127
    %v1080 = vshll.u32 %v1079, 23
    %v1081 = vor.u32 4788187, %v1080
    %v1082 = vand.u32 2147483647, %v1081
    %v1084 = vcvt.s32.f32 %v1077
    %v1085 = vmul.f32 %v1084, %v1082
    %v1086 = vxor.u32 %v1085, 2147483648
    %v1087 = vsel %vm1004, %v1086, %v1085
    %v1088 = vsub.s32 4, %v1064
    %v1089 = vsel %vm1004, %v1088, %v1064
    %v1090 = vsel %vm1003, %v788, %v1087
    %v1091 = vsel %vm1003, 0, %v1089
    %v1092 = vcosq.f32.pop %v1090
    %v1093 = vsinq.f32.pop %v1090
    %vm1094 = vweird.f32 %v788
    %v1095 = vadd.s32 %v1091, 3
    %v1096 = vand.u32 %v1095, 3
    %vm1097 = vcmp.lt.s32.totalorder %v1096, 2
    %vm1098 = vcmp.eq.s32.totalorder %v1096, 0
    %v1099 = vxor.u32 %v1093, 2147483648
    %v1100 = vsel %vm1098, %v1092, %v1099
    %vm1101 = vcmp.eq.s32.totalorder %v1096, 2
    %v1102 = vxor.u32 %v1092, 2147483648
    %v1103 = vsel %vm1101, %v1102, %v1093
    %v1104 = vsel %vm1097, %v1100, %v1103
    %v1105 = vsel %vm1094, nan, %v1104
    %v1106 = vand.u32 2147483647, %v793
    %vm1107 = vcmp.le.f32.partialorder %v1106, 0.7853982
    %vm1108 = vcmp.lt.s32.totalorder %v793, 0
    %v1109 = vand.u32 %v793, 2139095040
    %v1110 = vshrl.u32 %v1109, 23
    %v1111 = vsub.s32 %v1110, 127
    %v1112 = vand.u32 2147483647, %v793
    %v1113 = vand.u32 %v1112, 8388607
    %v1114 = vor.u32 %v1113, 8388608
    %v1115 = vsub.s32 0, %v1114
    %v1116 = vadd.s32 %v1111, 1
    %vm1117 = vcmp.gt.s32.totalorder %v1116, 0
    %v1118 = vsel %vm1117, %v1116, 0
    %v1119 = vshrl.u32 %v1118, 5
    %v1120 = vand.u32 %v1118, 31
    %v1121 = vsub.s32 32, %v1120
    %v1122 = vshrl.u32 683565275, %v1121
    %v1123 = vshll.u32 683565275, %v1120
    %v1124 = vshrl.u32 2475754826, %v1121
    %v1125 = vor.u32 %v1123, %v1124
    %v1126 = vshll.u32 2475754826, %v1120
    %v1127 = vshrl.u32 2131351028, %v1121
    %v1128 = vor.u32 %v1126, %v1127
    %v1129 = vshll.u32 2131351028, %v1120
    %v1130 = vshrl.u32 2102212464, %v1121
    %v1131 = vor.u32 %v1129, %v1130
    %v1132 = vshll.u32 2102212464, %v1120
    %v1133 = vshrl.u32 920167782, %v1121
    %v1134 = vor.u32 %v1132, %v1133
    %v1135 = vshll.u32 920167782, %v1120
    %v1136 = vshrl.u32 1326507024, %v1121
    %v1137 = vor.u32 %v1135, %v1136
    %vm1138 = vcmp.lt.s32.totalorder %v1119, 1
    %vm1139 = vcmp.lt.s32.totalorder %v1119, 2
    %vm1140 = vcmp.lt.s32.totalorder %v1119, 3
    %vm1141 = vcmp.lt.s32.totalorder %v1119, 4
    %v1142 = vsel %vm1138, %v1122, %v1125
    %v1143 = vsel %vm1141, %v1131, 2102212464
    %v1144 = vsel %vm1140, %v1128, %v1143
    %v1145 = vsel %vm1139, %v1142, %v1144
    %v1146 = vsel %vm1138, %v1125, %v1128
    %v1147 = vsel %vm1141, %v1134, 920167782
    %v1148 = vsel %vm1140, %v1131, %v1147
    %v1149 = vsel %vm1139, %v1146, %v1148
    %v1150 = vsel %vm1138, %v1128, %v1131
    %v1151 = vsel %vm1141, %v1137, 1326507024
    %v1152 = vsel %vm1140, %v1134, %v1151
    %v1153 = vsel %vm1139, %v1150, %v1152
    %v1154 = vshll.u32 %v1114, 8
    %v1155 = vmul.u32.u64.compose %v1154, %v1153
    %v1156 = vextract.low.u32 %v1155
    %v1157 = vextract.high.u32 %v1155
    %v1158 = vmul.u32.u64.compose %v1154, %v1149
    %v1159 = vextract.low.u32 %v1158
    %v1160 = vextract.high.u32 %v1158
    %v1161 = vmul.u32 %v1154, %v1145
    %v1162 = vadd.s32 %v1157, %v1159
    %vm1163 = vc.u32 %v1157, %v1159
    %v1164 = vadd.s32 %v1160, 1
    %v1165 = vsel %vm1163, %v1164, %v1160
    %v1166 = vadd.s32 %v1161, %v1165
    %v1167 = vadd.s32 %v1166, 536870912
    %v1168 = vshrl.u32 %v1167, 30
    %v1169 = vshll.u32 %v1168, 30
    %v1170 = vsub.s32 %v1166, %v1169
    %vm1171 = vcmp.lt.s32.totalorder %v1170, 0
    %v1172 = vsub.s32 0, %v1170
    %v1173 = vsel %vm1171, %v1172, %v1170
    %v1174 = vclz %v1173
    %v1175 = vsub.s32 %v1174, 2
    %vm1176 = vcmp.gt.s32.totalorder 0, %v1175
    %v1177 = vsel %vm1176, 0, %v1175
    %v1178 = vsub.s32 32, %v1177
    %v1179 = vshll.u32 %v1170, %v1177
    %v1180 = vshrl.u32 %v1162, %v1178
    %v1181 = vor.u32 %v1179, %v1180
    %v1182 = vsub.s32 4294967266, %v1177
    %v1183 = vadd.s32 %v1182, 127
    %v1184 = vshll.u32 %v1183, 23
    %v1185 = vor.u32 4788187, %v1184
    %v1186 = vand.u32 2147483647, %v1185
    %v1188 = vcvt.s32.f32 %v1181
    %v1189 = vmul.f32 %v1188, %v1186
    %v1190 = vxor.u32 %v1189, 2147483648
    %v1191 = vsel %vm1108, %v1190, %v1189
    %v1192 = vsub.s32 4, %v1168
    %v1193 = vsel %vm1108, %v1192, %v1168
    %v1194 = vsel %vm1107, %v793, %v1191
    %v1195 = vsel %vm1107, 0, %v1193
    %v1196 = vcosq.f32.pop %v1194
    %v1197 = vsinq.f32.pop %v1194
    %vm1198 = vweird.f32 %v793
    %v1199 = vadd.s32 %v1195, 3
    %v1200 = vand.u32 %v1199, 3
    %vm1201 = vcmp.lt.s32.totalorder %v1200, 2
    %vm1202 = vcmp.eq.s32.totalorder %v1200, 0
    %v1203 = vxor.u32 %v1197, 2147483648
    %v1204 = vsel %vm1202, %v1196, %v1203
    %vm1205 = vcmp.eq.s32.totalorder %v1200, 2
    %v1206 = vxor.u32 %v1196, 2147483648
    %v1207 = vsel %vm1205, %v1206, %v1197
    %v1208 = vsel %vm1201, %v1204, %v1207
    %v1209 = vsel %vm1198, nan, %v1208
    %1212 = vrot.lane.b32.xlu0 %v898, 127
    %v1213 = vpop.permute.xlu0 %1212
    %1214 = vrot.lane.b32.xlu0 %v1001, 127
    %v1215 = vpop.permute.xlu0 %1214
    %v1218 = vmul.f32 %v898, %v1213
    %v1219 = vmul.f32 %v1001, %v1215
    %v1220 = vsub.f32 0.0, %v898
    %v1221 = vsub.f32 0.0, %v1001
    %1224 = vrot.lane.b32.xlu0 %v1105, 127
    %v1225 = vpop.permute.xlu0 %1224
    %1226 = vrot.lane.b32.xlu0 %v1209, 127
    %v1227 = vpop.permute.xlu0 %1226
    %v1230 = vmul.f32 %v1220, %v1225
    %v1231 = vmul.f32 %v1221, %v1227
    %v1232 = vmul.f32 %v1105, %v1225
    %v1233 = vmul.f32 %v1209, %v1227
    %1234 = vrot.lane.b32.xlu0 %v898, 126
    %v1235 = vpop.permute.xlu0 %1234
    %1236 = vrot.lane.b32.xlu0 %v1001, 126
    %v1237 = vpop.permute.xlu0 %1236
    %v1240 = vmul.f32 %v1232, %v1235
    %v1241 = vmul.f32 %v1233, %v1237
    %1242 = vrot.lane.b32.xlu0 %v1105, 126
    %v1243 = vpop.permute.xlu0 %1242
    %1244 = vrot.lane.b32.xlu0 %v1209, 126
    %v1245 = vpop.permute.xlu0 %1244
    %v1248 = vmul.f32 %v898, %v1243
    %v1249 = vmul.f32 %v1001, %v1245
    %v1250 = vadd.f32 %v1240, %v1248
    %v1251 = vadd.f32 %v1241, %v1249
    %v1252 = vsub.f32 0.0, %v1105
    %v1253 = vsub.f32 0.0, %v1209
    %v1254 = vmul.f32 %v1252, %v1225
    %v1255 = vmul.f32 %v1253, %v1227
    %v1256 = vmul.f32 %v1254, %v1243
    %v1257 = vmul.f32 %v1255, %v1245
    %v1258 = vmul.f32 %v898, %v1235
    %v1259 = vmul.f32 %v1001, %v1237
    %v1260 = vadd.f32 %v1256, %v1258
    %v1261 = vadd.f32 %v1257, %v1259
    %v1262 = vmul.f32 %v1252, %v1213
    %v1263 = vmul.f32 %v1253, %v1215
    %v1264 = vmul.f32 %v1230, %v1235
    %v1265 = vmul.f32 %v1231, %v1237
    %v1266 = vmul.f32 %v1105, %v1243
    %v1267 = vmul.f32 %v1209, %v1245
    %v1268 = vadd.f32 %v1264, %v1266
    %v1269 = vadd.f32 %v1265, %v1267
    %v1270 = vmul.f32 %v898, %v1225
    %v1271 = vmul.f32 %v1001, %v1227
    %v1272 = vmul.f32 %v1270, %v1243
    %v1273 = vmul.f32 %v1271, %v1245
    %v1274 = vmul.f32 %v1105, %v1235
    %v1275 = vmul.f32 %v1209, %v1237
    %v1276 = vadd.f32 %v1272, %v1274
    %v1277 = vadd.f32 %v1273, %v1275
    %1280 = vrot.lane.b32.xlu0 %v1218, 127
    %v1281 = vpop.permute.xlu0 %1280
    %1282 = vrot.lane.b32.xlu0 %v1219, 127
    %v1283 = vpop.permute.xlu0 %1282
    %1286 = vrot.lane.b32.xlu0 %v1105, 1
    %v1287 = vpop.permute.xlu0 %1286
    %1288 = vrot.lane.b32.xlu0 %v1209, 1
    %v1289 = vpop.permute.xlu0 %1288
    %1294 = vrot.lane.b32.xlu0 %v1250, 3
    %v1295 = vpop.permute.xlu0 %1294
    %1296 = vrot.lane.b32.xlu0 %v1251, 3
    %v1297 = vpop.permute.xlu0 %1296
    %1302 = vrot.lane.b32.xlu0 %v1260, 4
    %v1303 = vpop.permute.xlu0 %1302
    %1304 = vrot.lane.b32.xlu0 %v1261, 4
    %v1305 = vpop.permute.xlu0 %1304
    %1310 = vrot.lane.b32.xlu0 %v1262, 5
    %v1311 = vpop.permute.xlu0 %1310
    %1312 = vrot.lane.b32.xlu0 %v1263, 5
    %v1313 = vpop.permute.xlu0 %1312
    %1318 = vrot.lane.b32.xlu0 %v1268, 6
    %v1319 = vpop.permute.xlu0 %1318
    %1320 = vrot.lane.b32.xlu0 %v1269, 6
    %v1321 = vpop.permute.xlu0 %1320
    %1326 = vrot.lane.b32.xlu0 %v1276, 7
    %v1327 = vpop.permute.xlu0 %1326
    %1328 = vrot.lane.b32.xlu0 %v1277, 7
    %v1329 = vpop.permute.xlu0 %1328
    %1332 = vrot.lane.b32.xlu0 %v1218, 8
    %v1333 = vpop.permute.xlu0 %1332
    %1334 = vrot.lane.b32.xlu0 %v1219, 8
    %v1335 = vpop.permute.xlu0 %1334
    %1340 = vrot.lane.b32.xlu0 %v788, 6
    %v1341 = vpop.permute.xlu0 %1340
    %1342 = vrot.lane.b32.xlu0 %v793, 6
    %v1343 = vpop.permute.xlu0 %1342
    %vm1346 = vcmask 7168
    %v1347 = vsel %vm1346, %v1281, %v1230
    %v1348 = vsel %vm1346, %v1283, %v1231
    %vm1349 = vcmask 15360
    %v1350 = vsel %vm1349, %v1347, %v1287
    %v1351 = vsel %vm1349, %v1348, %v1289
    %vm1352 = vcmask 23552
    %v1353 = vsel %vm1352, %v1350, %v1295
    %v1354 = vsel %vm1352, %v1351, %v1297
    %vm1355 = vcmask 31744
    %v1356 = vsel %vm1355, %v1353, %v1303
    %v1357 = vsel %vm1355, %v1354, %v1305
    %vm1358 = vcmask 39936
    %v1359 = vsel %vm1358, %v1356, %v1311
    %v1360 = vsel %vm1358, %v1357, %v1313
    %vm1361 = vcmask 48128
    %v1362 = vsel %vm1361, %v1359, %v1319
    %v1363 = vsel %vm1361, %v1360, %v1321
    %vm1364 = vcmask 56320
    %v1365 = vsel %vm1364, %v1362, %v1327
    %v1366 = vsel %vm1364, %v1363, %v1329
    %v1367 = vsel %vm254, %v1365, %v1333
    %v1368 = vsel %vm254, %v1366, %v1335
    %vm1369 = vcmask 72704
    %v1370 = vsel %vm1369, %v1367, %v1341
    %v1371 = vsel %vm1369, %v1368, %v1343
    %vm1372 = vcmask 130048
    %1373 = vst.msk [vmem:[#allocation2] sm:$0xff] %vm1372, %v1370
    %1374 = vst.msk [vmem:[#allocation2 + $0x8] sm:$0xff] %vm1372, %v1371
    // Predicated region
    $region10: #{tpu_custom_call.1} parent=1 // pred_check
      _
    $region11: #{tpu_custom_call.1} parent=1 // pred_check_branch
      %1376 = sbr.rel (0) target = $region13
    $region12: #{tpu_custom_call.1} parent=1 // pred_region
      %s1378 = ssub.s32 256, 256
      %1379 = vsyncadd [#allocation3], %s1378
      %s1380 = sshll.u32 [#allocation2], 4
      %s1381 = int_to_ptr.vmem [resolvable:$true] %s1380
      %1386 = dma.vmem_to_hbm [thread:$0]  %s1381, 256, %s2, [#allocation3], 128, 128, 8
    $region13: #{tpu_custom_call.1} parent=1 // pred_fallthru
      _
    // Predicated region
    $region14: #{tpu_custom_call.1} parent=1 // pred_check
      _
    $region15: #{tpu_custom_call.1} parent=1 // pred_check_branch
      %1388 = sbr.rel (0) target = $region17
    $region16: #{tpu_custom_call.1} parent=1 // pred_region
      %1389 = dma.done [#allocation3], 256
    $region17: #{tpu_custom_call.1} parent=1 // pred_fallthru
      _
    %1390 = vsyncpa [#allocation3], 1

</llo_original>
